<compile_context>
chip_gen: v6e
topology: v6e:2x2x1
jax: 0.10.0
libtpu: 0.0.40
codegen_flags: <defaults>
</compile_context>

<pallas_src>
import math

import jax
import jax.numpy as jnp
from jax.experimental import pallas as pl
from jax.experimental.pallas import tpu as pltpu

# ---- config (small, consistent with the module) ----
B = 2           # batch
N = 8           # sequence length (tokens)
D = 32          # embedding dim
H = 4           # num_heads
HD = D // H     # head dim
T = B * N       # tokens handled by the single fused program
MLP_RATIO = 4.0
HID = int(D * MLP_RATIO)   # 128
EPS = 1e-5                 # nn.LayerNorm default
SCALE = HD ** -0.5         # qk_scale=None -> head_dim ** -0.5


def _layernorm(x, w, b):
    # x: (T, D), w/b: (1, D); normalize over last dim (matches nn.LayerNorm(dim))
    mu = jnp.mean(x, axis=-1, keepdims=True)
    xc = x - mu
    var = jnp.mean(xc * xc, axis=-1, keepdims=True)
    return xc * jax.lax.rsqrt(var + EPS) * w + b


def _erf(z):
    # Abramowitz & Stegun 7.1.26 polynomial (max abs err 1.5e-7): keeps exact-erf
    # GELU semantics (nn.GELU default) using only exp/mul/add, which all lower
    # cleanly in Mosaic.  The divide goes to the EUP (approx recip + 1 Newton
    # step -> ~f32-accurate) so the VALU only sees mul/add.
    a1, a2, a3, a4, a5 = 0.254829592, -0.284496736, 1.421413741, -1.453152027, 1.061405429
    p = 0.3275911
    az = jnp.abs(z)
    w = 1.0 + p * az
    t = pl.reciprocal(w, approx=True)
    t = t * (2.0 - w * t)                       # one Newton-Raphson step
    poly = ((((a5 * t + a4) * t + a3) * t + a2) * t + a1) * t
    y = 1.0 - poly * jnp.exp(-az * az)
    return jnp.where(z >= 0, y, -y)


def _gelu_exact(x):
    return 0.5 * x * (1.0 + _erf(x * (1.0 / math.sqrt(2.0))))


def block_kernel(x_ref,                      # (T, D)
                 wqkv_ref,                   # (D, 3D) fused qkv weight
                 wproj_ref,                  # (D, D)  fused output projection
                 w1_ref, w2_ref,             # (D, HID), (HID, D)
                 vecs_ref,                   # (8, 128) packed small vectors
                 o_ref):                     # (T, D)
    x = x_ref[...]                                                   # (T, D)

    # Unpack the small parameter vectors from the single padded slab.
    vecs = vecs_ref[...]
    ln1_w, ln1_b = vecs[0:1, :D], vecs[1:2, :D]
    bproj        = vecs[2:3, :D]
    ln2_w, ln2_b = vecs[3:4, :D], vecs[4:5, :D]
    b1           = vecs[5:6, :HID]
    b2           = vecs[6:7, :D]

    # ---- norm1 ----
    h1 = _layernorm(x, ln1_w, ln1_b)

    # ---- attention (qkv_bias=False) ----------------------------------------
    # ONE fused, lane-dense QKV matmul: (T, D) @ (D, 3D) -> (T, 3D).
    qkv = jnp.dot(h1, wqkv_ref[...], preferred_element_type=jnp.float32)

    # (batch, head) split with static sublane/lane slices stacked on a new
    # major axis g = b*H + h -- layout plumbing only (no MXU pushes, no VMEM
    # scratch round-trips).
    def split_heads(base):
        return jnp.stack(
            [qkv[b * N:(b + 1) * N, base + h * HD: base + (h + 1) * HD]
             for b in range(B) for h in range(H)], axis=0)           # (B*H, N, HD)

    q = split_heads(0)
    k = split_heads(D)
    v = split_heads(2 * D)

    # Scores with batch/head as a single einsum batch axis: (B*H, N, N).
    # No cross-batch scores, no block-diagonal mask.
    s = jnp.einsum('gnd,gmd->gnm', q, k,
                   preferred_element_type=jnp.float32) * SCALE
    s = s - jnp.max(s, axis=-1, keepdims=True)
    p = jnp.exp(s)
    p = p / jnp.sum(p, axis=-1, keepdims=True)    # exact divide (128 elems, accuracy-critical)

    ctx = jnp.einsum('gnm,gmd->gnd', p, v,
                     preferred_element_type=jnp.float32)             # (B*H, N, HD)

    # Re-interleave heads on the lane axis (a few XLU shuffles) and run the
    # output projection as ONE K=D matmul against the fused (D, D) weight.
    ctx_flat = jnp.concatenate(
        [jnp.concatenate([ctx[b * H + h] for h in range(H)], axis=-1)   # (N, D)
         for b in range(B)], axis=0)                                    # (T, D)
    attn = jnp.dot(ctx_flat, wproj_ref[...],
                   preferred_element_type=jnp.float32) + bproj

    # ---- residual 1 (drop_path / dropout prob = 0 -> identity) ----
    x1 = x + attn

    # ---- norm2 + MLP ----
    h2 = _layernorm(x1, ln2_w, ln2_b)
    h2 = jnp.dot(h2, w1_ref[...], preferred_element_type=jnp.float32) + b1
    h2 = _gelu_exact(h2)                          # nn.GELU default = exact (erf)
    h2 = jnp.dot(h2, w2_ref[...], preferred_element_type=jnp.float32) + b2

    # ---- residual 2 ----
    # NOTE: D=32 < 128 lanes -> stores are masked (vst.msk); lane-dense output
    # would need D to be a multiple of 128 (a model-shape issue, not fixable here).
    o_ref[...] = x1 + h2


def block_forward(x, params):
    (ln1_w, ln1_b, wqkv, wproj, bproj, ln2_w, ln2_b, w1, b1, w2, b2) = params

    bsz, n, d = x.shape
    x2 = x.reshape(bsz * n, d)                    # flatten tokens (wrapper-side, free)

    # Pack the seven small bias/scale vectors into ONE (8, 128) slab:
    # one DMA descriptor + one VMEM tile instead of seven padded ones.
    vecs = jnp.zeros((8, 128), jnp.float32)
    for row, vec in enumerate((ln1_w, ln1_b, bproj, ln2_w, ln2_b, b1, b2)):
        flat = vec.reshape(-1)
        vecs = vecs.at[row, :flat.shape[0]].set(flat)

    # Single fused program: whole (B*N, D) token slab + all weights resident in
    # VMEM (<200 KB incl. lane padding) -> no grid, no per-step pipeline
    # overhead.  On v7x (2 TensorCores) use grid=(B,) with an index_map picking
    # each batch's (N, D) slab and dimension_semantics=("parallel",) so each
    # core takes one sequence; on v5e/v6e (1 TC) the extra grid step is pure
    # overhead, so keep the collapsed single program.
    out2 = pl.pallas_call(
        block_kernel,
        out_shape=jax.ShapeDtypeStruct((bsz * n, d), jnp.float32),
        in_specs=[pl.BlockSpec(memory_space=pltpu.MemorySpace.VMEM)
                  for _ in range(6)],
        out_specs=pl.BlockSpec(memory_space=pltpu.MemorySpace.VMEM),
    )(x2, wqkv, wproj, w1, w2, vecs)
    return out2.reshape(bsz, n, d)


def reference_forward(x, params):
    (ln1_w, ln1_b, wqkv, wproj, bproj, ln2_w, ln2_b, w1, b1, w2, b2) = params

    def ln(y, w, b):
        mu = jnp.mean(y, -1, keepdims=True)
        var = jnp.mean((y - mu) ** 2, -1, keepdims=True)
        return (y - mu) / jnp.sqrt(var + EPS) * w + b

    # Full-f32 matmuls so the reference itself isn't the accuracy bottleneck
    # (XLA's default TPU matmul precision for f32 is bf16-based).
    with jax.default_matmul_precision("float32"):
        h = ln(x, ln1_w, ln1_b)
        qkv = h @ wqkv                                 # (B, N, 3D)
        qkv = qkv.reshape(B, N, 3, H, HD).transpose(2, 0, 3, 1, 4)
        q, k, v = qkv[0], qkv[1], qkv[2]               # (B, H, N, HD)
        a = jnp.einsum('bhnd,bhmd->bhnm', q, k) * SCALE
        a = jax.nn.softmax(a, axis=-1)
        o = jnp.einsum('bhnm,bhmd->bhnd', a, v).transpose(0, 2, 1, 3).reshape(B, N, D)
        o = o @ wproj + bproj
        x1 = x + o
        h2 = ln(x1, ln2_w, ln2_b)
        h2 = jax.nn.gelu(h2 @ w1 + b1, approximate=False)
        h2 = h2 @ w2 + b2
        return x1 + h2


def init_params(key):
    ks = jax.random.split(key, 8)
    s = 0.05
    ln1_w = jnp.ones((1, D), jnp.float32)
    ln1_b = jnp.zeros((1, D), jnp.float32)
    wqkv = s * jax.random.normal(ks[0], (D, 3 * D), jnp.float32)
    wproj = s * jax.random.normal(ks[1], (D, D), jnp.float32)
    bproj = s * jax.random.normal(ks[2], (1, D), jnp.float32)
    ln2_w = jnp.ones((1, D), jnp.float32)
    ln2_b = jnp.zeros((1, D), jnp.float32)
    w1 = s * jax.random.normal(ks[3], (D, HID), jnp.float32)
    b1 = s * jax.random.normal(ks[4], (1, HID), jnp.float32)
    w2 = s * jax.random.normal(ks[5], (HID, D), jnp.float32)
    b2 = s * jax.random.normal(ks[6], (1, D), jnp.float32)
    return (ln1_w, ln1_b, wqkv, wproj, bproj, ln2_w, ln2_b, w1, b1, w2, b2)


if __name__ == "__main__":
    key = jax.random.PRNGKey(0)
    kx, kp = jax.random.split(key)
    x = jax.random.normal(kx, (B, N, D), jnp.float32)
    params = init_params(kp)

    out = jax.block_until_ready(block_forward(x, params))
    ref = reference_forward(x, params)

    assert out.shape == (B, N, D)
    # Softmax divide is exact again (was approx-reciprocal); remaining budget
    # covers erf-polynomial error (~1.5e-7) and MXU-f32-pass vs XLA rounding
    # differences in the dots.
    assert jnp.allclose(out, ref, atol=1e-3, rtol=1e-3), (
        "mismatch vs pure-JAX reference; max abs diff = "
        f"{float(jnp.max(jnp.abs(out - ref)))}")
    print("KERNEL_OK")
</pallas_src>

<mosaic_0001>
module attributes {stable_mosaic.version = 11 : i64} {
  func.func @block_kernel(%arg0: memref<16x32xf32, #tpu.memory_space<vmem>>, %arg1: memref<32x96xf32, #tpu.memory_space<vmem>>, %arg2: memref<32x32xf32, #tpu.memory_space<vmem>>, %arg3: memref<32x128xf32, #tpu.memory_space<vmem>>, %arg4: memref<128x32xf32, #tpu.memory_space<vmem>>, %arg5: memref<8x128xf32, #tpu.memory_space<vmem>>, %arg6: memref<16x32xf32, #tpu.memory_space<vmem>>) attributes {dimension_semantics = [], scalar_prefetch = 0 : i64, scratch_operands = 0 : i64, tpu.core_type = #tpu.core_type<tc>} {
    %c0 = arith.constant 0 : index
    %c0_0 = arith.constant 0 : index
    %0 = vector.load %arg0[%c0, %c0_0] : memref<16x32xf32, #tpu.memory_space<vmem>>, vector<16x32xf32>
    %c0_1 = arith.constant 0 : index
    %c0_2 = arith.constant 0 : index
    %1 = vector.load %arg5[%c0_1, %c0_2] : memref<8x128xf32, #tpu.memory_space<vmem>>, vector<8x128xf32>
    %2 = vector.extract_strided_slice %1 {offsets = [0, 0], sizes = [1, 32], strides = [1, 1]} : vector<8x128xf32> to vector<1x32xf32>
    %3 = vector.extract_strided_slice %1 {offsets = [1, 0], sizes = [1, 32], strides = [1, 1]} : vector<8x128xf32> to vector<1x32xf32>
    %4 = vector.extract_strided_slice %1 {offsets = [2, 0], sizes = [1, 32], strides = [1, 1]} : vector<8x128xf32> to vector<1x32xf32>
    %5 = vector.extract_strided_slice %1 {offsets = [3, 0], sizes = [1, 32], strides = [1, 1]} : vector<8x128xf32> to vector<1x32xf32>
    %6 = vector.extract_strided_slice %1 {offsets = [4, 0], sizes = [1, 32], strides = [1, 1]} : vector<8x128xf32> to vector<1x32xf32>
    %7 = vector.extract_strided_slice %1 {offsets = [5, 0], sizes = [1, 128], strides = [1, 1]} : vector<8x128xf32> to vector<1x128xf32>
    %8 = vector.extract_strided_slice %1 {offsets = [6, 0], sizes = [1, 32], strides = [1, 1]} : vector<8x128xf32> to vector<1x32xf32>
    %cst = arith.constant dense<0.000000e+00> : vector<16xf32>
    %9 = vector.multi_reduction <add>, %0, %cst [1] : vector<16x32xf32> to vector<16xf32>
    %10 = vector.shape_cast %9 : vector<16xf32> to vector<16x1xf32>
    %cst_3 = arith.constant 3.200000e+01 : f32
    %11 = vector.broadcast %cst_3 : f32 to vector<16x1xf32>
    %12 = arith.divf %10, %11 : vector<16x1xf32>
    %13 = vector.broadcast %12 : vector<16x1xf32> to vector<16x32xf32>
    %14 = arith.subf %0, %13 : vector<16x32xf32>
    %15 = arith.mulf %14, %14 : vector<16x32xf32>
    %cst_4 = arith.constant dense<0.000000e+00> : vector<16xf32>
    %16 = vector.multi_reduction <add>, %15, %cst_4 [1] : vector<16x32xf32> to vector<16xf32>
    %17 = vector.shape_cast %16 : vector<16xf32> to vector<16x1xf32>
    %cst_5 = arith.constant 3.200000e+01 : f32
    %18 = vector.broadcast %cst_5 : f32 to vector<16x1xf32>
    %19 = arith.divf %17, %18 : vector<16x1xf32>
    %cst_6 = arith.constant 9.99999974E-6 : f32
    %20 = vector.broadcast %cst_6 : f32 to vector<16x1xf32>
    %21 = arith.addf %19, %20 : vector<16x1xf32>
    %22 = math.rsqrt %21 : vector<16x1xf32>
    %23 = vector.broadcast %22 : vector<16x1xf32> to vector<16x32xf32>
    %24 = arith.mulf %14, %23 : vector<16x32xf32>
    %25 = vector.broadcast %2 : vector<1x32xf32> to vector<16x32xf32>
    %26 = arith.mulf %24, %25 : vector<16x32xf32>
    %27 = vector.broadcast %3 : vector<1x32xf32> to vector<16x32xf32>
    %28 = arith.addf %26, %27 : vector<16x32xf32>
    %c0_7 = arith.constant 0 : index
    %c0_8 = arith.constant 0 : index
    %29 = vector.load %arg1[%c0_7, %c0_8] : memref<32x96xf32, #tpu.memory_space<vmem>>, vector<32x96xf32>
    %cst_9 = arith.constant dense<0.000000e+00> : vector<16x96xf32>
    %30 = tpu.matmul %28, %29, %cst_9 {dimension_numbers = #tpu.dot_dimension_numbers<[1], [0], [0], [1], [0, 0, 1, 1], [], []>} : vector<16x32xf32>, vector<32x96xf32>, vector<16x96xf32> -> vector<16x96xf32>
    %31 = vector.extract_strided_slice %30 {offsets = [0, 0], sizes = [8, 8], strides = [1, 1]} : vector<16x96xf32> to vector<8x8xf32>
    %32 = vector.extract_strided_slice %30 {offsets = [0, 8], sizes = [8, 8], strides = [1, 1]} : vector<16x96xf32> to vector<8x8xf32>
    %33 = vector.extract_strided_slice %30 {offsets = [0, 16], sizes = [8, 8], strides = [1, 1]} : vector<16x96xf32> to vector<8x8xf32>
    %34 = vector.extract_strided_slice %30 {offsets = [0, 24], sizes = [8, 8], strides = [1, 1]} : vector<16x96xf32> to vector<8x8xf32>
    %35 = vector.extract_strided_slice %30 {offsets = [8, 0], sizes = [8, 8], strides = [1, 1]} : vector<16x96xf32> to vector<8x8xf32>
    %36 = vector.extract_strided_slice %30 {offsets = [8, 8], sizes = [8, 8], strides = [1, 1]} : vector<16x96xf32> to vector<8x8xf32>
    %37 = vector.extract_strided_slice %30 {offsets = [8, 16], sizes = [8, 8], strides = [1, 1]} : vector<16x96xf32> to vector<8x8xf32>
    %38 = vector.extract_strided_slice %30 {offsets = [8, 24], sizes = [8, 8], strides = [1, 1]} : vector<16x96xf32> to vector<8x8xf32>
    %39 = vector.shape_cast %31 : vector<8x8xf32> to vector<1x8x8xf32>
    %40 = vector.shape_cast %32 : vector<8x8xf32> to vector<1x8x8xf32>
    %41 = vector.shape_cast %33 : vector<8x8xf32> to vector<1x8x8xf32>
    %42 = vector.shape_cast %34 : vector<8x8xf32> to vector<1x8x8xf32>
    %43 = vector.shape_cast %35 : vector<8x8xf32> to vector<1x8x8xf32>
    %44 = vector.shape_cast %36 : vector<8x8xf32> to vector<1x8x8xf32>
    %45 = vector.shape_cast %37 : vector<8x8xf32> to vector<1x8x8xf32>
    %46 = vector.shape_cast %38 : vector<8x8xf32> to vector<1x8x8xf32>
    %47 = tpu.concatenate %39, %40, %41, %42, %43, %44, %45, %46 in 0 : vector<1x8x8xf32>, vector<1x8x8xf32>, vector<1x8x8xf32>, vector<1x8x8xf32>, vector<1x8x8xf32>, vector<1x8x8xf32>, vector<1x8x8xf32>, vector<1x8x8xf32> -> vector<8x8x8xf32>
    %48 = vector.extract_strided_slice %30 {offsets = [0, 32], sizes = [8, 8], strides = [1, 1]} : vector<16x96xf32> to vector<8x8xf32>
    %49 = vector.extract_strided_slice %30 {offsets = [0, 40], sizes = [8, 8], strides = [1, 1]} : vector<16x96xf32> to vector<8x8xf32>
    %50 = vector.extract_strided_slice %30 {offsets = [0, 48], sizes = [8, 8], strides = [1, 1]} : vector<16x96xf32> to vector<8x8xf32>
    %51 = vector.extract_strided_slice %30 {offsets = [0, 56], sizes = [8, 8], strides = [1, 1]} : vector<16x96xf32> to vector<8x8xf32>
    %52 = vector.extract_strided_slice %30 {offsets = [8, 32], sizes = [8, 8], strides = [1, 1]} : vector<16x96xf32> to vector<8x8xf32>
    %53 = vector.extract_strided_slice %30 {offsets = [8, 40], sizes = [8, 8], strides = [1, 1]} : vector<16x96xf32> to vector<8x8xf32>
    %54 = vector.extract_strided_slice %30 {offsets = [8, 48], sizes = [8, 8], strides = [1, 1]} : vector<16x96xf32> to vector<8x8xf32>
    %55 = vector.extract_strided_slice %30 {offsets = [8, 56], sizes = [8, 8], strides = [1, 1]} : vector<16x96xf32> to vector<8x8xf32>
    %56 = vector.shape_cast %48 : vector<8x8xf32> to vector<1x8x8xf32>
    %57 = vector.shape_cast %49 : vector<8x8xf32> to vector<1x8x8xf32>
    %58 = vector.shape_cast %50 : vector<8x8xf32> to vector<1x8x8xf32>
    %59 = vector.shape_cast %51 : vector<8x8xf32> to vector<1x8x8xf32>
    %60 = vector.shape_cast %52 : vector<8x8xf32> to vector<1x8x8xf32>
    %61 = vector.shape_cast %53 : vector<8x8xf32> to vector<1x8x8xf32>
    %62 = vector.shape_cast %54 : vector<8x8xf32> to vector<1x8x8xf32>
    %63 = vector.shape_cast %55 : vector<8x8xf32> to vector<1x8x8xf32>
    %64 = tpu.concatenate %56, %57, %58, %59, %60, %61, %62, %63 in 0 : vector<1x8x8xf32>, vector<1x8x8xf32>, vector<1x8x8xf32>, vector<1x8x8xf32>, vector<1x8x8xf32>, vector<1x8x8xf32>, vector<1x8x8xf32>, vector<1x8x8xf32> -> vector<8x8x8xf32>
    %65 = vector.extract_strided_slice %30 {offsets = [0, 64], sizes = [8, 8], strides = [1, 1]} : vector<16x96xf32> to vector<8x8xf32>
    %66 = vector.extract_strided_slice %30 {offsets = [0, 72], sizes = [8, 8], strides = [1, 1]} : vector<16x96xf32> to vector<8x8xf32>
    %67 = vector.extract_strided_slice %30 {offsets = [0, 80], sizes = [8, 8], strides = [1, 1]} : vector<16x96xf32> to vector<8x8xf32>
    %68 = vector.extract_strided_slice %30 {offsets = [0, 88], sizes = [8, 8], strides = [1, 1]} : vector<16x96xf32> to vector<8x8xf32>
    %69 = vector.extract_strided_slice %30 {offsets = [8, 64], sizes = [8, 8], strides = [1, 1]} : vector<16x96xf32> to vector<8x8xf32>
    %70 = vector.extract_strided_slice %30 {offsets = [8, 72], sizes = [8, 8], strides = [1, 1]} : vector<16x96xf32> to vector<8x8xf32>
    %71 = vector.extract_strided_slice %30 {offsets = [8, 80], sizes = [8, 8], strides = [1, 1]} : vector<16x96xf32> to vector<8x8xf32>
    %72 = vector.extract_strided_slice %30 {offsets = [8, 88], sizes = [8, 8], strides = [1, 1]} : vector<16x96xf32> to vector<8x8xf32>
    %73 = vector.shape_cast %65 : vector<8x8xf32> to vector<1x8x8xf32>
    %74 = vector.shape_cast %66 : vector<8x8xf32> to vector<1x8x8xf32>
    %75 = vector.shape_cast %67 : vector<8x8xf32> to vector<1x8x8xf32>
    %76 = vector.shape_cast %68 : vector<8x8xf32> to vector<1x8x8xf32>
    %77 = vector.shape_cast %69 : vector<8x8xf32> to vector<1x8x8xf32>
    %78 = vector.shape_cast %70 : vector<8x8xf32> to vector<1x8x8xf32>
    %79 = vector.shape_cast %71 : vector<8x8xf32> to vector<1x8x8xf32>
    %80 = vector.shape_cast %72 : vector<8x8xf32> to vector<1x8x8xf32>
    %81 = tpu.concatenate %73, %74, %75, %76, %77, %78, %79, %80 in 0 : vector<1x8x8xf32>, vector<1x8x8xf32>, vector<1x8x8xf32>, vector<1x8x8xf32>, vector<1x8x8xf32>, vector<1x8x8xf32>, vector<1x8x8xf32>, vector<1x8x8xf32> -> vector<8x8x8xf32>
    "tpu.trace_start"() <{level = 10 : i32, message = "gnd,gmd->gnm"}> : () -> ()
    %cst_10 = arith.constant dense<0.000000e+00> : vector<8x8x8xf32>
    %82 = tpu.matmul %47, %64, %cst_10 {dimension_numbers = #tpu.dot_dimension_numbers<[2], [2], [1], [1], [0, 0, 0, 1, 1, 1], [0], [0]>} : vector<8x8x8xf32>, vector<8x8x8xf32>, vector<8x8x8xf32> -> vector<8x8x8xf32>
    "tpu.trace_stop"() : () -> ()
    %cst_11 = arith.constant 0.353553385 : f32
    %83 = vector.broadcast %cst_11 : f32 to vector<8x8x8xf32>
    %84 = arith.mulf %82, %83 : vector<8x8x8xf32>
    %cst_12 = arith.constant dense<0xFF800000> : vector<8x8xf32>
    %85 = vector.multi_reduction <maximumf>, %84, %cst_12 [2] : vector<8x8x8xf32> to vector<8x8xf32>
    %86 = vector.shape_cast %85 : vector<8x8xf32> to vector<8x8x1xf32>
    %87 = vector.broadcast %86 : vector<8x8x1xf32> to vector<8x8x8xf32>
    %88 = arith.subf %84, %87 : vector<8x8x8xf32>
    %89 = math.exp %88 : vector<8x8x8xf32>
    %cst_13 = arith.constant dense<0.000000e+00> : vector<8x8xf32>
    %90 = vector.multi_reduction <add>, %89, %cst_13 [2] : vector<8x8x8xf32> to vector<8x8xf32>
    %91 = vector.shape_cast %90 : vector<8x8xf32> to vector<8x8x1xf32>
    %92 = vector.broadcast %91 : vector<8x8x1xf32> to vector<8x8x8xf32>
    %93 = arith.divf %89, %92 : vector<8x8x8xf32>
    "tpu.trace_start"() <{level = 10 : i32, message = "gnm,gmd->gnd"}> : () -> ()
    %cst_14 = arith.constant dense<0.000000e+00> : vector<8x8x8xf32>
    %94 = tpu.matmul %93, %81, %cst_14 {dimension_numbers = #tpu.dot_dimension_numbers<[2], [1], [1], [2], [0, 0, 0, 1, 1, 2], [0], [0]>} : vector<8x8x8xf32>, vector<8x8x8xf32>, vector<8x8x8xf32> -> vector<8x8x8xf32>
    "tpu.trace_stop"() : () -> ()
    %95 = vector.extract_strided_slice %94 {offsets = [0, 0, 0], sizes = [1, 8, 8], strides = [1, 1, 1]} : vector<8x8x8xf32> to vector<1x8x8xf32>
    %96 = vector.shape_cast %95 : vector<1x8x8xf32> to vector<8x8xf32>
    %97 = vector.extract_strided_slice %94 {offsets = [1, 0, 0], sizes = [1, 8, 8], strides = [1, 1, 1]} : vector<8x8x8xf32> to vector<1x8x8xf32>
    %98 = vector.shape_cast %97 : vector<1x8x8xf32> to vector<8x8xf32>
    %99 = vector.extract_strided_slice %94 {offsets = [2, 0, 0], sizes = [1, 8, 8], strides = [1, 1, 1]} : vector<8x8x8xf32> to vector<1x8x8xf32>
    %100 = vector.shape_cast %99 : vector<1x8x8xf32> to vector<8x8xf32>
    %101 = vector.extract_strided_slice %94 {offsets = [3, 0, 0], sizes = [1, 8, 8], strides = [1, 1, 1]} : vector<8x8x8xf32> to vector<1x8x8xf32>
    %102 = vector.shape_cast %101 : vector<1x8x8xf32> to vector<8x8xf32>
    %103 = tpu.concatenate %96, %98, %100, %102 in 1 : vector<8x8xf32>, vector<8x8xf32>, vector<8x8xf32>, vector<8x8xf32> -> vector<8x32xf32>
    %104 = vector.extract_strided_slice %94 {offsets = [4, 0, 0], sizes = [1, 8, 8], strides = [1, 1, 1]} : vector<8x8x8xf32> to vector<1x8x8xf32>
    %105 = vector.shape_cast %104 : vector<1x8x8xf32> to vector<8x8xf32>
    %106 = vector.extract_strided_slice %94 {offsets = [5, 0, 0], sizes = [1, 8, 8], strides = [1, 1, 1]} : vector<8x8x8xf32> to vector<1x8x8xf32>
    %107 = vector.shape_cast %106 : vector<1x8x8xf32> to vector<8x8xf32>
    %108 = vector.extract_strided_slice %94 {offsets = [6, 0, 0], sizes = [1, 8, 8], strides = [1, 1, 1]} : vector<8x8x8xf32> to vector<1x8x8xf32>
    %109 = vector.shape_cast %108 : vector<1x8x8xf32> to vector<8x8xf32>
    %110 = vector.extract_strided_slice %94 {offsets = [7, 0, 0], sizes = [1, 8, 8], strides = [1, 1, 1]} : vector<8x8x8xf32> to vector<1x8x8xf32>
    %111 = vector.shape_cast %110 : vector<1x8x8xf32> to vector<8x8xf32>
    %112 = tpu.concatenate %105, %107, %109, %111 in 1 : vector<8x8xf32>, vector<8x8xf32>, vector<8x8xf32>, vector<8x8xf32> -> vector<8x32xf32>
    %113 = tpu.concatenate %103, %112 in 0 : vector<8x32xf32>, vector<8x32xf32> -> vector<16x32xf32>
    %c0_15 = arith.constant 0 : index
    %c0_16 = arith.constant 0 : index
    %114 = vector.load %arg2[%c0_15, %c0_16] : memref<32x32xf32, #tpu.memory_space<vmem>>, vector<32x32xf32>
    %cst_17 = arith.constant dense<0.000000e+00> : vector<16x32xf32>
    %115 = tpu.matmul %113, %114, %cst_17 {dimension_numbers = #tpu.dot_dimension_numbers<[1], [0], [0], [1], [0, 0, 1, 1], [], []>} : vector<16x32xf32>, vector<32x32xf32>, vector<16x32xf32> -> vector<16x32xf32>
    %116 = vector.broadcast %4 : vector<1x32xf32> to vector<16x32xf32>
    %117 = arith.addf %115, %116 : vector<16x32xf32>
    %118 = arith.addf %0, %117 : vector<16x32xf32>
    %cst_18 = arith.constant dense<0.000000e+00> : vector<16xf32>
    %119 = vector.multi_reduction <add>, %118, %cst_18 [1] : vector<16x32xf32> to vector<16xf32>
    %120 = vector.shape_cast %119 : vector<16xf32> to vector<16x1xf32>
    %cst_19 = arith.constant 3.200000e+01 : f32
    %121 = vector.broadcast %cst_19 : f32 to vector<16x1xf32>
    %122 = arith.divf %120, %121 : vector<16x1xf32>
    %123 = vector.broadcast %122 : vector<16x1xf32> to vector<16x32xf32>
    %124 = arith.subf %118, %123 : vector<16x32xf32>
    %125 = arith.mulf %124, %124 : vector<16x32xf32>
    %cst_20 = arith.constant dense<0.000000e+00> : vector<16xf32>
    %126 = vector.multi_reduction <add>, %125, %cst_20 [1] : vector<16x32xf32> to vector<16xf32>
    %127 = vector.shape_cast %126 : vector<16xf32> to vector<16x1xf32>
    %cst_21 = arith.constant 3.200000e+01 : f32
    %128 = vector.broadcast %cst_21 : f32 to vector<16x1xf32>
    %129 = arith.divf %127, %128 : vector<16x1xf32>
    %cst_22 = arith.constant 9.99999974E-6 : f32
    %130 = vector.broadcast %cst_22 : f32 to vector<16x1xf32>
    %131 = arith.addf %129, %130 : vector<16x1xf32>
    %132 = math.rsqrt %131 : vector<16x1xf32>
    %133 = vector.broadcast %132 : vector<16x1xf32> to vector<16x32xf32>
    %134 = arith.mulf %124, %133 : vector<16x32xf32>
    %135 = vector.broadcast %5 : vector<1x32xf32> to vector<16x32xf32>
    %136 = arith.mulf %134, %135 : vector<16x32xf32>
    %137 = vector.broadcast %6 : vector<1x32xf32> to vector<16x32xf32>
    %138 = arith.addf %136, %137 : vector<16x32xf32>
    %c0_23 = arith.constant 0 : index
    %c0_24 = arith.constant 0 : index
    %139 = vector.load %arg3[%c0_23, %c0_24] : memref<32x128xf32, #tpu.memory_space<vmem>>, vector<32x128xf32>
    %cst_25 = arith.constant dense<0.000000e+00> : vector<16x128xf32>
    %140 = tpu.matmul %138, %139, %cst_25 {dimension_numbers = #tpu.dot_dimension_numbers<[1], [0], [0], [1], [0, 0, 1, 1], [], []>} : vector<16x32xf32>, vector<32x128xf32>, vector<16x128xf32> -> vector<16x128xf32>
    %141 = vector.broadcast %7 : vector<1x128xf32> to vector<16x128xf32>
    %142 = arith.addf %140, %141 : vector<16x128xf32>
    %cst_26 = arith.constant 5.000000e-01 : f32
    %143 = vector.broadcast %cst_26 : f32 to vector<16x128xf32>
    %144 = arith.mulf %143, %142 : vector<16x128xf32>
    %cst_27 = arith.constant 0.707106769 : f32
    %145 = vector.broadcast %cst_27 : f32 to vector<16x128xf32>
    %146 = arith.mulf %142, %145 : vector<16x128xf32>
    %147 = math.absf %146 : vector<16x128xf32>
    %cst_28 = arith.constant 0.327591091 : f32
    %148 = vector.broadcast %cst_28 : f32 to vector<16x128xf32>
    %149 = arith.mulf %148, %147 : vector<16x128xf32>
    %cst_29 = arith.constant 1.000000e+00 : f32
    %150 = vector.broadcast %cst_29 : f32 to vector<16x128xf32>
    %151 = arith.addf %150, %149 : vector<16x128xf32>
    %152 = tpu.reciprocal %151 {approx = true} : vector<16x128xf32> -> vector<16x128xf32>
    %153 = arith.mulf %151, %152 : vector<16x128xf32>
    %cst_30 = arith.constant 2.000000e+00 : f32
    %154 = vector.broadcast %cst_30 : f32 to vector<16x128xf32>
    %155 = arith.subf %154, %153 : vector<16x128xf32>
    %156 = arith.mulf %152, %155 : vector<16x128xf32>
    %cst_31 = arith.constant 1.06140542 : f32
    %157 = vector.broadcast %cst_31 : f32 to vector<16x128xf32>
    %158 = arith.mulf %157, %156 : vector<16x128xf32>
    %cst_32 = arith.constant -1.45315206 : f32
    %159 = vector.broadcast %cst_32 : f32 to vector<16x128xf32>
    %160 = arith.addf %158, %159 : vector<16x128xf32>
    %161 = arith.mulf %160, %156 : vector<16x128xf32>
    %cst_33 = arith.constant 1.42141378 : f32
    %162 = vector.broadcast %cst_33 : f32 to vector<16x128xf32>
    %163 = arith.addf %161, %162 : vector<16x128xf32>
    %164 = arith.mulf %163, %156 : vector<16x128xf32>
    %cst_34 = arith.constant -0.284496725 : f32
    %165 = vector.broadcast %cst_34 : f32 to vector<16x128xf32>
    %166 = arith.addf %164, %165 : vector<16x128xf32>
    %167 = arith.mulf %166, %156 : vector<16x128xf32>
    %cst_35 = arith.constant 0.254829586 : f32
    %168 = vector.broadcast %cst_35 : f32 to vector<16x128xf32>
    %169 = arith.addf %167, %168 : vector<16x128xf32>
    %170 = arith.mulf %169, %156 : vector<16x128xf32>
    %cst_36 = arith.constant 0.000000e+00 : f32
    %171 = vector.broadcast %cst_36 : f32 to vector<16x128xf32>
    %172 = arith.subf %171, %147 : vector<16x128xf32>
    %173 = arith.mulf %172, %147 : vector<16x128xf32>
    %174 = math.exp %173 : vector<16x128xf32>
    %175 = arith.mulf %170, %174 : vector<16x128xf32>
    %cst_37 = arith.constant 1.000000e+00 : f32
    %176 = vector.broadcast %cst_37 : f32 to vector<16x128xf32>
    %177 = arith.subf %176, %175 : vector<16x128xf32>
    %cst_38 = arith.constant 0.000000e+00 : f32
    %178 = vector.broadcast %cst_38 : f32 to vector<16x128xf32>
    %179 = arith.cmpf oge, %146, %178 : vector<16x128xf32>
    %cst_39 = arith.constant 0.000000e+00 : f32
    %180 = vector.broadcast %cst_39 : f32 to vector<16x128xf32>
    %181 = arith.subf %180, %177 : vector<16x128xf32>
    %182 = arith.select %179, %177, %181 : vector<16x128xi1>, vector<16x128xf32>
    %cst_40 = arith.constant 1.000000e+00 : f32
    %183 = vector.broadcast %cst_40 : f32 to vector<16x128xf32>
    %184 = arith.addf %183, %182 : vector<16x128xf32>
    %185 = arith.mulf %144, %184 : vector<16x128xf32>
    %c0_41 = arith.constant 0 : index
    %c0_42 = arith.constant 0 : index
    %186 = vector.load %arg4[%c0_41, %c0_42] : memref<128x32xf32, #tpu.memory_space<vmem>>, vector<128x32xf32>
    %cst_43 = arith.constant dense<0.000000e+00> : vector<16x32xf32>
    %187 = tpu.matmul %185, %186, %cst_43 {dimension_numbers = #tpu.dot_dimension_numbers<[1], [0], [0], [1], [0, 0, 1, 1], [], []>} : vector<16x128xf32>, vector<128x32xf32>, vector<16x32xf32> -> vector<16x32xf32>
    %188 = vector.broadcast %8 : vector<1x32xf32> to vector<16x32xf32>
    %189 = arith.addf %187, %188 : vector<16x32xf32>
    %190 = arith.addf %118, %189 : vector<16x32xf32>
    %c0_44 = arith.constant 0 : index
    %c0_45 = arith.constant 0 : index
    %191 = vector.load %arg6[%c0_44, %c0_45] : memref<16x32xf32, #tpu.memory_space<vmem>>, vector<16x32xf32>
    tpu.vector_store %arg6[%c0_44, %c0_45], %190 {strides = array<i32>} : memref<16x32xf32, #tpu.memory_space<vmem>>, vector<16x32xf32>,
    return
  }
}

</mosaic_0001>

<llo_original>
// kernel: tpu_custom_call.1
$region0: #{tpu_custom_call.1}
  #allocation0 [shape = 'u32[]', space=smem, size = 0x4, offset = 0x4, fixed_abs, tag = 'smem constant byte address 0x4 - core index']
  #allocation1 [shape = 'u32[144,128]{1,0:T(1,128)}', space=vmem, size = 0x12000, scoped, tag = 'internal scratch']
  %s0 = inlined_call_operand.vmem [shape: f32[16,32], index: 0, kind: input, shape index: {}]
  %s1 = inlined_call_operand.vmem [shape: f32[32,96], index: 1, kind: input, shape index: {}]
  %s2 = inlined_call_operand.vmem [shape: f32[32,32], index: 2, kind: input, shape index: {}]
  %s3 = inlined_call_operand.vmem [shape: f32[32,128], index: 3, kind: input, shape index: {}]
  %s4 = inlined_call_operand.vmem [shape: f32[128,32], index: 4, kind: input, shape index: {}]
  %s5 = inlined_call_operand.vmem [shape: f32[8,128], index: 5, kind: input, shape index: {}]
  %s6 = inlined_call_operand.hbm [shape: f32[16,32], index: 6, kind: output, shape index: {}]
  %s7 = sld [smem:[#allocation0]]
  $region34: #{tpu_custom_call.1} parent=0
    _
  %s9 = ssub.s32 1, %s7
  %s10 = scalar_select 0, %s9, %s7
  $region1: #{tpu_custom_call.1} parent=0
    #allocation2 [shape = 'u8[8192]{0}', space=vmem, size = 0x2000, scoped, tag = 'output window, operand 0, single buffered']
    #allocation3 [shape = 's32[1]{0}', space=sflag, size = 0x4, scoped, tag = 'scoped memory for tpu_custom_call.1']
    %11 = vsyncpa [#allocation3], 0
    // Predicated region
    $region2: #{tpu_custom_call.1} parent=1 // pred_check
      _
    $region3: #{tpu_custom_call.1} parent=1 // pred_check_branch
      %13 = sbr.rel (0) target = $region5
    $region4: #{tpu_custom_call.1} parent=1 // pred_region
      _
    $region5: #{tpu_custom_call.1} parent=1 // pred_fallthru
      _
    // Predicated region
    $region6: #{tpu_custom_call.1} parent=1 // pred_check
      _
    $region7: #{tpu_custom_call.1} parent=1 // pred_check_branch
      %15 = sbr.rel (0) target = $region9
    $region8: #{tpu_custom_call.1} parent=1 // pred_region
      _
    $region9: #{tpu_custom_call.1} parent=1 // pred_fallthru
      _
    // Predicated region
    $region10: #{tpu_custom_call.1} parent=1 // pred_check
      _
    $region11: #{tpu_custom_call.1} parent=1 // pred_check_branch
      %17 = sbr.rel (0) target = $region13
    $region12: #{tpu_custom_call.1} parent=1 // pred_region
      _
    $region13: #{tpu_custom_call.1} parent=1 // pred_fallthru
      _
    // Predicated region
    $region14: #{tpu_custom_call.1} parent=1 // pred_check
      _
    $region15: #{tpu_custom_call.1} parent=1 // pred_check_branch
      %19 = sbr.rel (0) target = $region17
    $region16: #{tpu_custom_call.1} parent=1 // pred_region
      _
    $region17: #{tpu_custom_call.1} parent=1 // pred_fallthru
      _
    // Predicated region
    $region18: #{tpu_custom_call.1} parent=1 // pred_check
      _
    $region19: #{tpu_custom_call.1} parent=1 // pred_check_branch
      %21 = sbr.rel (0) target = $region21
    $region20: #{tpu_custom_call.1} parent=1 // pred_region
      _
    $region21: #{tpu_custom_call.1} parent=1 // pred_fallthru
      _
    // Predicated region
    $region22: #{tpu_custom_call.1} parent=1 // pred_check
      _
    $region23: #{tpu_custom_call.1} parent=1 // pred_check_branch
      %23 = sbr.rel (0) target = $region25
    $region24: #{tpu_custom_call.1} parent=1 // pred_region
      _
    $region25: #{tpu_custom_call.1} parent=1 // pred_fallthru
      _
    %v24 = vld [vmem:[%s0] sm:$0xff]
    %v25 = vld [vmem:[%s0 + $0x8] sm:$0xff]
    %v26 = vld [vmem:[%s5] sm:$0xff]
    %vm27 = vcmask 261120
    %v28 = vsel %vm27, %v24, 0.0
    %29 = vadd.xlane.f32.xlu0 %v28
    %v30 = vpop.xlane.xlu0 %29
    %v31 = vsel %vm27, %v25, 0.0
    %32 = vadd.xlane.f32.xlu0 %v31
    %v33 = vpop.xlane.xlu0 %32
    %v34 = vrcp.pop 32.0
    %v35 = vmul.f32 %v30, %v34
    %v36 = vmul.f32 %v33, %v34
    %v37 = vsub.f32 %v24, %v35
    %v38 = vsub.f32 %v25, %v36
    %v39 = vmul.f32 %v37, %v37
    %v40 = vmul.f32 %v38, %v38
    %v41 = vsel %vm27, %v39, 0.0
    %42 = vadd.xlane.f32.xlu0 %v41
    %v43 = vpop.xlane.xlu0 %42
    %v44 = vsel %vm27, %v40, 0.0
    %45 = vadd.xlane.f32.xlu0 %v44
    %v46 = vpop.xlane.xlu0 %45
    %v47 = vmul.f32 %v43, %v34
    %v48 = vmul.f32 %v46, %v34
    %v49 = vadd.f32 %v47, 1e-05
    %v50 = vadd.f32 %v48, 1e-05
    %v51 = vrsqrt.pop %v49
    %v52 = vrsqrt.pop %v50
    %v53 = vmul.f32 %v37, %v51
    %v54 = vmul.f32 %v38, %v52
    %v55 = vlaneseq
    %v56 = vshrl.u32 %v55, 7
    %v57 = vsub.s32 0, %v56
    %v58 = vrot.slane %v26, %v57
    %v59 = vmul.f32 %v53, %v58
    %v60 = vmul.f32 %v54, %v58
    %v61 = vlaneseq
    %v62 = vshrl.u32 %v61, 7
    %v63 = vsub.s32 1, %v62
    %v64 = vrot.slane %v26, %v63
    %v65 = vadd.f32 %v59, %v64
    %v66 = vadd.f32 %v60, %v64
    %v67 = vld [vmem:[%s1] sm:$0xff]
    %v68 = vld [vmem:[%s1 + $0x8] sm:$0xff]
    %v69 = vld [vmem:[%s1 + $0x10] sm:$0xff]
    %v70 = vld [vmem:[%s1 + $0x18] sm:$0xff]
    %v72 = vsel %vm27, %v65, 0
    %v75 = vsel %vm27, %v66, 0
    %77 = vmatprep.subr.mxu0 0.0
    %78 = vmatpush1.msra.mxu0 0.0
    %79 = vmatprep.subr.mxu0 0.0
    %80 = vmatpush1.msra.mxu0 0.0
    %81 = vmatprep.subr.mxu0 0.0
    %82 = vmatpush1.msra.mxu0 0.0
    %83 = vmatprep.subr.mxu0 0.0
    %84 = vmatpush1.msra.mxu0 0.0
    %85 = vmatprep.subr.mxu0 0.0
    %86 = vmatpush1.msra.mxu0 0.0
    %87 = vmatprep.subr.mxu0 0.0
    %88 = vmatpush1.msra.mxu0 0.0
    %89 = vmatprep.subr.mxu0 0.0
    %90 = vmatpush1.msra.mxu0 0.0
    %91 = vmatprep.subr.mxu0 0.0
    %92 = vmatpush1.msra.mxu0 0.0
    %93 = vmatprep.subr.mxu0 0.0
    %94 = vmatpush1.msra.mxu0 0.0
    %95 = vmatprep.subr.mxu0 0.0
    %96 = vmatpush1.msra.mxu0 0.0
    %97 = vmatprep.subr.mxu0 0.0
    %98 = vmatpush1.msra.mxu0 0.0
    %99 = vmatprep.subr.mxu0 0.0
    %100 = vmatpush1.msra.mxu0 0.0
    %101 = vmatprep.subr.mxu0 0.0
    %102 = vmatpush1.msra.mxu0 %v70
    %103 = vmatprep.subr.mxu0 0.0
    %104 = vmatpush1.msra.mxu0 %v69
    %105 = vmatprep.subr.mxu0 0.0
    %106 = vmatpush1.msra.mxu0 %v68
    %107 = vmatprep.subr.mxu0 0.0
    %108 = vmatpush1.msra.mxu0 %v67
    %109 = vmatprep.subr.mxu0 0.0
    %110 = vmatpush2.msra.mxu0 0.0
    %111 = vmatprep.subr.mxu0 0.0
    %112 = vmatpush2.msra.mxu0 0.0
    %113 = vmatprep.subr.mxu0 0.0
    %114 = vmatpush2.msra.mxu0 0.0
    %115 = vmatprep.subr.mxu0 0.0
    %116 = vmatpush2.msra.mxu0 0.0
    %117 = vmatprep.subr.mxu0 0.0
    %118 = vmatpush2.msra.mxu0 0.0
    %119 = vmatprep.subr.mxu0 0.0
    %120 = vmatpush2.msra.mxu0 0.0
    %121 = vmatprep.subr.mxu0 0.0
    %122 = vmatpush2.msra.mxu0 0.0
    %123 = vmatprep.subr.mxu0 0.0
    %124 = vmatpush2.msra.mxu0 0.0
    %125 = vmatprep.subr.mxu0 0.0
    %126 = vmatpush2.msra.mxu0 0.0
    %127 = vmatprep.subr.mxu0 0.0
    %128 = vmatpush2.msra.mxu0 0.0
    %129 = vmatprep.subr.mxu0 0.0
    %130 = vmatpush2.msra.mxu0 0.0
    %131 = vmatprep.subr.mxu0 0.0
    %132 = vmatpush2.msra.mxu0 0.0
    %133 = vmatprep.subr.mxu0 0.0
    %134 = vmatpush2.msra.mxu0 0.0
    %135 = vmatprep.subr.mxu0 0.0
    %136 = vmatpush2.msra.mxu0 0.0
    %137 = vmatprep.subr.mxu0 0.0
    %138 = vmatpush2.msra.mxu0 0.0
    %139 = vmatprep.subr.mxu0 0.0
    %140 = vmatpush2.msra.mxu0 0.0
    %141 = vmatprep.mubr.f32.mxu0 0.0
    %142 = vmatmul.mubr.f32.gmra.mxu0 %v72
    %v143 = vpop.f32.mrf.mxu0
    %v144 = vadd.f32 0.0, %v143
    %v145 = vpop.f32.mrf.mxu0
    %146 = vmatprep.mubr.f32.mxu0 0.0
    %147 = vmatmul.mubr.f32.gmra.mxu0 %v75
    %v148 = vpop.f32.mrf.mxu0
    %v149 = vadd.f32 0.0, %v148
    %v150 = vpop.f32.mrf.mxu0
    %151 = vdwg.mxu0
    %153 = vrot.lane.b32.xlu0 %v144, 120
    %v154 = vpop.permute.xlu0 %153
    %155 = vrot.lane.b32.xlu0 %v144, 112
    %v156 = vpop.permute.xlu0 %155
    %157 = vrot.lane.b32.xlu0 %v144, 104
    %v158 = vpop.permute.xlu0 %157
    %160 = vrot.lane.b32.xlu0 %v149, 120
    %v161 = vpop.permute.xlu0 %160
    %162 = vrot.lane.b32.xlu0 %v149, 112
    %v163 = vpop.permute.xlu0 %162
    %164 = vrot.lane.b32.xlu0 %v149, 104
    %v165 = vpop.permute.xlu0 %164
    %166 = vrot.lane.b32.xlu0 %v144, 96
    %v167 = vpop.permute.xlu0 %166
    %vm168 = vcmask 64512
    %v169 = vsel %vm168, %v144, 0
    %v171 = vsel %vm168, %v167, 0
    %173 = vmatprep.subr.mxu0 0.0
    %174 = vmatpush1.xpose.msra.mxu0 0.0
    %175 = vmatprep.subr.mxu0 0.0
    %176 = vmatpush1.xpose.msra.mxu0 0.0
    %177 = vmatprep.subr.mxu0 0.0
    %178 = vmatpush1.xpose.msra.mxu0 0.0
    %179 = vmatprep.subr.mxu0 0.0
    %180 = vmatpush1.xpose.msra.mxu0 0.0
    %181 = vmatprep.subr.mxu0 0.0
    %182 = vmatpush1.xpose.msra.mxu0 0.0
    %183 = vmatprep.subr.mxu0 0.0
    %184 = vmatpush1.xpose.msra.mxu0 0.0
    %185 = vmatprep.subr.mxu0 0.0
    %186 = vmatpush1.xpose.msra.mxu0 0.0
    %187 = vmatprep.subr.mxu0 0.0
    %188 = vmatpush1.xpose.msra.mxu0 0.0
    %189 = vmatprep.subr.mxu0 0.0
    %190 = vmatpush1.xpose.msra.mxu0 0.0
    %191 = vmatprep.subr.mxu0 0.0
    %192 = vmatpush1.xpose.msra.mxu0 0.0
    %193 = vmatprep.subr.mxu0 0.0
    %194 = vmatpush1.xpose.msra.mxu0 0.0
    %195 = vmatprep.subr.mxu0 0.0
    %196 = vmatpush1.xpose.msra.mxu0 0.0
    %197 = vmatprep.subr.mxu0 0.0
    %198 = vmatpush1.xpose.msra.mxu0 0.0
    %199 = vmatprep.subr.mxu0 0.0
    %200 = vmatpush1.xpose.msra.mxu0 0.0
    %201 = vmatprep.subr.mxu0 0.0
    %202 = vmatpush1.xpose.msra.mxu0 0.0
    %203 = vmatprep.subr.mxu0 0.0
    %204 = vmatpush1.xpose.msra.mxu0 %v171
    %205 = vmatprep.subr.mxu0 0.0
    %206 = vmatpush2.xpose.msra.mxu0 0.0
    %207 = vmatprep.subr.mxu0 0.0
    %208 = vmatpush2.xpose.msra.mxu0 0.0
    %209 = vmatprep.subr.mxu0 0.0
    %210 = vmatpush2.xpose.msra.mxu0 0.0
    %211 = vmatprep.subr.mxu0 0.0
    %212 = vmatpush2.xpose.msra.mxu0 0.0
    %213 = vmatprep.subr.mxu0 0.0
    %214 = vmatpush2.xpose.msra.mxu0 0.0
    %215 = vmatprep.subr.mxu0 0.0
    %216 = vmatpush2.xpose.msra.mxu0 0.0
    %217 = vmatprep.subr.mxu0 0.0
    %218 = vmatpush2.xpose.msra.mxu0 0.0
    %219 = vmatprep.subr.mxu0 0.0
    %220 = vmatpush2.xpose.msra.mxu0 0.0
    %221 = vmatprep.subr.mxu0 0.0
    %222 = vmatpush2.xpose.msra.mxu0 0.0
    %223 = vmatprep.subr.mxu0 0.0
    %224 = vmatpush2.xpose.msra.mxu0 0.0
    %225 = vmatprep.subr.mxu0 0.0
    %226 = vmatpush2.xpose.msra.mxu0 0.0
    %227 = vmatprep.subr.mxu0 0.0
    %228 = vmatpush2.xpose.msra.mxu0 0.0
    %229 = vmatprep.subr.mxu0 0.0
    %230 = vmatpush2.xpose.msra.mxu0 0.0
    %231 = vmatprep.subr.mxu0 0.0
    %232 = vmatpush2.xpose.msra.mxu0 0.0
    %233 = vmatprep.subr.mxu0 0.0
    %234 = vmatpush2.xpose.msra.mxu0 0.0
    %235 = vmatprep.subr.mxu0 0.0
    %236 = vmatpush2.xpose.msra.mxu0 0.0
    %237 = vmatprep.mubr.f32.mxu0 0.0
    %238 = vmatmul.mubr.f32.gmra.mxu0 %v169
    %v239 = vpop.f32.mrf.mxu0
    %v240 = vadd.f32 0.0, %v239
    %v241 = vpop.f32.mrf.mxu0
    %242 = vdwg.mxu0
    %243 = vrot.lane.b32.xlu0 %v154, 96
    %v244 = vpop.permute.xlu0 %243
    %v245 = vsel %vm168, %v154, 0
    %v247 = vsel %vm168, %v244, 0
    %249 = vmatprep.subr.mxu0 0.0
    %250 = vmatpush1.xpose.msra.mxu0 0.0
    %251 = vmatprep.subr.mxu0 0.0
    %252 = vmatpush1.xpose.msra.mxu0 0.0
    %253 = vmatprep.subr.mxu0 0.0
    %254 = vmatpush1.xpose.msra.mxu0 0.0
    %255 = vmatprep.subr.mxu0 0.0
    %256 = vmatpush1.xpose.msra.mxu0 0.0
    %257 = vmatprep.subr.mxu0 0.0
    %258 = vmatpush1.xpose.msra.mxu0 0.0
    %259 = vmatprep.subr.mxu0 0.0
    %260 = vmatpush1.xpose.msra.mxu0 0.0
    %261 = vmatprep.subr.mxu0 0.0
    %262 = vmatpush1.xpose.msra.mxu0 0.0
    %263 = vmatprep.subr.mxu0 0.0
    %264 = vmatpush1.xpose.msra.mxu0 0.0
    %265 = vmatprep.subr.mxu0 0.0
    %266 = vmatpush1.xpose.msra.mxu0 0.0
    %267 = vmatprep.subr.mxu0 0.0
    %268 = vmatpush1.xpose.msra.mxu0 0.0
    %269 = vmatprep.subr.mxu0 0.0
    %270 = vmatpush1.xpose.msra.mxu0 0.0
    %271 = vmatprep.subr.mxu0 0.0
    %272 = vmatpush1.xpose.msra.mxu0 0.0
    %273 = vmatprep.subr.mxu0 0.0
    %274 = vmatpush1.xpose.msra.mxu0 0.0
    %275 = vmatprep.subr.mxu0 0.0
    %276 = vmatpush1.xpose.msra.mxu0 0.0
    %277 = vmatprep.subr.mxu0 0.0
    %278 = vmatpush1.xpose.msra.mxu0 0.0
    %279 = vmatprep.subr.mxu0 0.0
    %280 = vmatpush1.xpose.msra.mxu0 %v247
    %281 = vmatprep.subr.mxu0 0.0
    %282 = vmatpush2.xpose.msra.mxu0 0.0
    %283 = vmatprep.subr.mxu0 0.0
    %284 = vmatpush2.xpose.msra.mxu0 0.0
    %285 = vmatprep.subr.mxu0 0.0
    %286 = vmatpush2.xpose.msra.mxu0 0.0
    %287 = vmatprep.subr.mxu0 0.0
    %288 = vmatpush2.xpose.msra.mxu0 0.0
    %289 = vmatprep.subr.mxu0 0.0
    %290 = vmatpush2.xpose.msra.mxu0 0.0
    %291 = vmatprep.subr.mxu0 0.0
    %292 = vmatpush2.xpose.msra.mxu0 0.0
    %293 = vmatprep.subr.mxu0 0.0
    %294 = vmatpush2.xpose.msra.mxu0 0.0
    %295 = vmatprep.subr.mxu0 0.0
    %296 = vmatpush2.xpose.msra.mxu0 0.0
    %297 = vmatprep.subr.mxu0 0.0
    %298 = vmatpush2.xpose.msra.mxu0 0.0
    %299 = vmatprep.subr.mxu0 0.0
    %300 = vmatpush2.xpose.msra.mxu0 0.0
    %301 = vmatprep.subr.mxu0 0.0
    %302 = vmatpush2.xpose.msra.mxu0 0.0
    %303 = vmatprep.subr.mxu0 0.0
    %304 = vmatpush2.xpose.msra.mxu0 0.0
    %305 = vmatprep.subr.mxu0 0.0
    %306 = vmatpush2.xpose.msra.mxu0 0.0
    %307 = vmatprep.subr.mxu0 0.0
    %308 = vmatpush2.xpose.msra.mxu0 0.0
    %309 = vmatprep.subr.mxu0 0.0
    %310 = vmatpush2.xpose.msra.mxu0 0.0
    %311 = vmatprep.subr.mxu0 0.0
    %312 = vmatpush2.xpose.msra.mxu0 0.0
    %313 = vmatprep.mubr.f32.mxu0 0.0
    %314 = vmatmul.mubr.f32.gmra.mxu0 %v245
    %v315 = vpop.f32.mrf.mxu0
    %v316 = vadd.f32 0.0, %v315
    %v317 = vpop.f32.mrf.mxu0
    %318 = vdwg.mxu0
    %319 = vrot.lane.b32.xlu0 %v156, 96
    %v320 = vpop.permute.xlu0 %319
    %v321 = vsel %vm168, %v156, 0
    %v323 = vsel %vm168, %v320, 0
    %325 = vmatprep.subr.mxu0 0.0
    %326 = vmatpush1.xpose.msra.mxu0 0.0
    %327 = vmatprep.subr.mxu0 0.0
    %328 = vmatpush1.xpose.msra.mxu0 0.0
    %329 = vmatprep.subr.mxu0 0.0
    %330 = vmatpush1.xpose.msra.mxu0 0.0
    %331 = vmatprep.subr.mxu0 0.0
    %332 = vmatpush1.xpose.msra.mxu0 0.0
    %333 = vmatprep.subr.mxu0 0.0
    %334 = vmatpush1.xpose.msra.mxu0 0.0
    %335 = vmatprep.subr.mxu0 0.0
    %336 = vmatpush1.xpose.msra.mxu0 0.0
    %337 = vmatprep.subr.mxu0 0.0
    %338 = vmatpush1.xpose.msra.mxu0 0.0
    %339 = vmatprep.subr.mxu0 0.0
    %340 = vmatpush1.xpose.msra.mxu0 0.0
    %341 = vmatprep.subr.mxu0 0.0
    %342 = vmatpush1.xpose.msra.mxu0 0.0
    %343 = vmatprep.subr.mxu0 0.0
    %344 = vmatpush1.xpose.msra.mxu0 0.0
    %345 = vmatprep.subr.mxu0 0.0
    %346 = vmatpush1.xpose.msra.mxu0 0.0
    %347 = vmatprep.subr.mxu0 0.0
    %348 = vmatpush1.xpose.msra.mxu0 0.0
    %349 = vmatprep.subr.mxu0 0.0
    %350 = vmatpush1.xpose.msra.mxu0 0.0
    %351 = vmatprep.subr.mxu0 0.0
    %352 = vmatpush1.xpose.msra.mxu0 0.0
    %353 = vmatprep.subr.mxu0 0.0
    %354 = vmatpush1.xpose.msra.mxu0 0.0
    %355 = vmatprep.subr.mxu0 0.0
    %356 = vmatpush1.xpose.msra.mxu0 %v323
    %357 = vmatprep.subr.mxu0 0.0
    %358 = vmatpush2.xpose.msra.mxu0 0.0
    %359 = vmatprep.subr.mxu0 0.0
    %360 = vmatpush2.xpose.msra.mxu0 0.0
    %361 = vmatprep.subr.mxu0 0.0
    %362 = vmatpush2.xpose.msra.mxu0 0.0
    %363 = vmatprep.subr.mxu0 0.0
    %364 = vmatpush2.xpose.msra.mxu0 0.0
    %365 = vmatprep.subr.mxu0 0.0
    %366 = vmatpush2.xpose.msra.mxu0 0.0
    %367 = vmatprep.subr.mxu0 0.0
    %368 = vmatpush2.xpose.msra.mxu0 0.0
    %369 = vmatprep.subr.mxu0 0.0
    %370 = vmatpush2.xpose.msra.mxu0 0.0
    %371 = vmatprep.subr.mxu0 0.0
    %372 = vmatpush2.xpose.msra.mxu0 0.0
    %373 = vmatprep.subr.mxu0 0.0
    %374 = vmatpush2.xpose.msra.mxu0 0.0
    %375 = vmatprep.subr.mxu0 0.0
    %376 = vmatpush2.xpose.msra.mxu0 0.0
    %377 = vmatprep.subr.mxu0 0.0
    %378 = vmatpush2.xpose.msra.mxu0 0.0
    %379 = vmatprep.subr.mxu0 0.0
    %380 = vmatpush2.xpose.msra.mxu0 0.0
    %381 = vmatprep.subr.mxu0 0.0
    %382 = vmatpush2.xpose.msra.mxu0 0.0
    %383 = vmatprep.subr.mxu0 0.0
    %384 = vmatpush2.xpose.msra.mxu0 0.0
    %385 = vmatprep.subr.mxu0 0.0
    %386 = vmatpush2.xpose.msra.mxu0 0.0
    %387 = vmatprep.subr.mxu0 0.0
    %388 = vmatpush2.xpose.msra.mxu0 0.0
    %389 = vmatprep.mubr.f32.mxu0 0.0
    %390 = vmatmul.mubr.f32.gmra.mxu0 %v321
    %v391 = vpop.f32.mrf.mxu0
    %v392 = vadd.f32 0.0, %v391
    %v393 = vpop.f32.mrf.mxu0
    %394 = vdwg.mxu0
    %395 = vrot.lane.b32.xlu0 %v158, 96
    %v396 = vpop.permute.xlu0 %395
    %v397 = vsel %vm168, %v158, 0
    %v399 = vsel %vm168, %v396, 0
    %401 = vmatprep.subr.mxu0 0.0
    %402 = vmatpush1.xpose.msra.mxu0 0.0
    %403 = vmatprep.subr.mxu0 0.0
    %404 = vmatpush1.xpose.msra.mxu0 0.0
    %405 = vmatprep.subr.mxu0 0.0
    %406 = vmatpush1.xpose.msra.mxu0 0.0
    %407 = vmatprep.subr.mxu0 0.0
    %408 = vmatpush1.xpose.msra.mxu0 0.0
    %409 = vmatprep.subr.mxu0 0.0
    %410 = vmatpush1.xpose.msra.mxu0 0.0
    %411 = vmatprep.subr.mxu0 0.0
    %412 = vmatpush1.xpose.msra.mxu0 0.0
    %413 = vmatprep.subr.mxu0 0.0
    %414 = vmatpush1.xpose.msra.mxu0 0.0
    %415 = vmatprep.subr.mxu0 0.0
    %416 = vmatpush1.xpose.msra.mxu0 0.0
    %417 = vmatprep.subr.mxu0 0.0
    %418 = vmatpush1.xpose.msra.mxu0 0.0
    %419 = vmatprep.subr.mxu0 0.0
    %420 = vmatpush1.xpose.msra.mxu0 0.0
    %421 = vmatprep.subr.mxu0 0.0
    %422 = vmatpush1.xpose.msra.mxu0 0.0
    %423 = vmatprep.subr.mxu0 0.0
    %424 = vmatpush1.xpose.msra.mxu0 0.0
    %425 = vmatprep.subr.mxu0 0.0
    %426 = vmatpush1.xpose.msra.mxu0 0.0
    %427 = vmatprep.subr.mxu0 0.0
    %428 = vmatpush1.xpose.msra.mxu0 0.0
    %429 = vmatprep.subr.mxu0 0.0
    %430 = vmatpush1.xpose.msra.mxu0 0.0
    %431 = vmatprep.subr.mxu0 0.0
    %432 = vmatpush1.xpose.msra.mxu0 %v399
    %433 = vmatprep.subr.mxu0 0.0
    %434 = vmatpush2.xpose.msra.mxu0 0.0
    %435 = vmatprep.subr.mxu0 0.0
    %436 = vmatpush2.xpose.msra.mxu0 0.0
    %437 = vmatprep.subr.mxu0 0.0
    %438 = vmatpush2.xpose.msra.mxu0 0.0
    %439 = vmatprep.subr.mxu0 0.0
    %440 = vmatpush2.xpose.msra.mxu0 0.0
    %441 = vmatprep.subr.mxu0 0.0
    %442 = vmatpush2.xpose.msra.mxu0 0.0
    %443 = vmatprep.subr.mxu0 0.0
    %444 = vmatpush2.xpose.msra.mxu0 0.0
    %445 = vmatprep.subr.mxu0 0.0
    %446 = vmatpush2.xpose.msra.mxu0 0.0
    %447 = vmatprep.subr.mxu0 0.0
    %448 = vmatpush2.xpose.msra.mxu0 0.0
    %449 = vmatprep.subr.mxu0 0.0
    %450 = vmatpush2.xpose.msra.mxu0 0.0
    %451 = vmatprep.subr.mxu0 0.0
    %452 = vmatpush2.xpose.msra.mxu0 0.0
    %453 = vmatprep.subr.mxu0 0.0
    %454 = vmatpush2.xpose.msra.mxu0 0.0
    %455 = vmatprep.subr.mxu0 0.0
    %456 = vmatpush2.xpose.msra.mxu0 0.0
    %457 = vmatprep.subr.mxu0 0.0
    %458 = vmatpush2.xpose.msra.mxu0 0.0
    %459 = vmatprep.subr.mxu0 0.0
    %460 = vmatpush2.xpose.msra.mxu0 0.0
    %461 = vmatprep.subr.mxu0 0.0
    %462 = vmatpush2.xpose.msra.mxu0 0.0
    %463 = vmatprep.subr.mxu0 0.0
    %464 = vmatpush2.xpose.msra.mxu0 0.0
    %465 = vmatprep.mubr.f32.mxu0 0.0
    %466 = vmatmul.mubr.f32.gmra.mxu0 %v397
    %v467 = vpop.f32.mrf.mxu0
    %v468 = vadd.f32 0.0, %v467
    %v469 = vpop.f32.mrf.mxu0
    %470 = vdwg.mxu0
    %471 = vrot.lane.b32.xlu0 %v149, 96
    %v472 = vpop.permute.xlu0 %471
    %v473 = vsel %vm168, %v149, 0
    %v475 = vsel %vm168, %v472, 0
    %477 = vmatprep.subr.mxu0 0.0
    %478 = vmatpush1.xpose.msra.mxu0 0.0
    %479 = vmatprep.subr.mxu0 0.0
    %480 = vmatpush1.xpose.msra.mxu0 0.0
    %481 = vmatprep.subr.mxu0 0.0
    %482 = vmatpush1.xpose.msra.mxu0 0.0
    %483 = vmatprep.subr.mxu0 0.0
    %484 = vmatpush1.xpose.msra.mxu0 0.0
    %485 = vmatprep.subr.mxu0 0.0
    %486 = vmatpush1.xpose.msra.mxu0 0.0
    %487 = vmatprep.subr.mxu0 0.0
    %488 = vmatpush1.xpose.msra.mxu0 0.0
    %489 = vmatprep.subr.mxu0 0.0
    %490 = vmatpush1.xpose.msra.mxu0 0.0
    %491 = vmatprep.subr.mxu0 0.0
    %492 = vmatpush1.xpose.msra.mxu0 0.0
    %493 = vmatprep.subr.mxu0 0.0
    %494 = vmatpush1.xpose.msra.mxu0 0.0
    %495 = vmatprep.subr.mxu0 0.0
    %496 = vmatpush1.xpose.msra.mxu0 0.0
    %497 = vmatprep.subr.mxu0 0.0
    %498 = vmatpush1.xpose.msra.mxu0 0.0
    %499 = vmatprep.subr.mxu0 0.0
    %500 = vmatpush1.xpose.msra.mxu0 0.0
    %501 = vmatprep.subr.mxu0 0.0
    %502 = vmatpush1.xpose.msra.mxu0 0.0
    %503 = vmatprep.subr.mxu0 0.0
    %504 = vmatpush1.xpose.msra.mxu0 0.0
    %505 = vmatprep.subr.mxu0 0.0
    %506 = vmatpush1.xpose.msra.mxu0 0.0
    %507 = vmatprep.subr.mxu0 0.0
    %508 = vmatpush1.xpose.msra.mxu0 %v475
    %509 = vmatprep.subr.mxu0 0.0
    %510 = vmatpush2.xpose.msra.mxu0 0.0
    %511 = vmatprep.subr.mxu0 0.0
    %512 = vmatpush2.xpose.msra.mxu0 0.0
    %513 = vmatprep.subr.mxu0 0.0
    %514 = vmatpush2.xpose.msra.mxu0 0.0
    %515 = vmatprep.subr.mxu0 0.0
    %516 = vmatpush2.xpose.msra.mxu0 0.0
    %517 = vmatprep.subr.mxu0 0.0
    %518 = vmatpush2.xpose.msra.mxu0 0.0
    %519 = vmatprep.subr.mxu0 0.0
    %520 = vmatpush2.xpose.msra.mxu0 0.0
    %521 = vmatprep.subr.mxu0 0.0
    %522 = vmatpush2.xpose.msra.mxu0 0.0
    %523 = vmatprep.subr.mxu0 0.0
    %524 = vmatpush2.xpose.msra.mxu0 0.0
    %525 = vmatprep.subr.mxu0 0.0
    %526 = vmatpush2.xpose.msra.mxu0 0.0
    %527 = vmatprep.subr.mxu0 0.0
    %528 = vmatpush2.xpose.msra.mxu0 0.0
    %529 = vmatprep.subr.mxu0 0.0
    %530 = vmatpush2.xpose.msra.mxu0 0.0
    %531 = vmatprep.subr.mxu0 0.0
    %532 = vmatpush2.xpose.msra.mxu0 0.0
    %533 = vmatprep.subr.mxu0 0.0
    %534 = vmatpush2.xpose.msra.mxu0 0.0
    %535 = vmatprep.subr.mxu0 0.0
    %536 = vmatpush2.xpose.msra.mxu0 0.0
    %537 = vmatprep.subr.mxu0 0.0
    %538 = vmatpush2.xpose.msra.mxu0 0.0
    %539 = vmatprep.subr.mxu0 0.0
    %540 = vmatpush2.xpose.msra.mxu0 0.0
    %541 = vmatprep.mubr.f32.mxu0 0.0
    %542 = vmatmul.mubr.f32.gmra.mxu0 %v473
    %v543 = vpop.f32.mrf.mxu0
    %v544 = vadd.f32 0.0, %v543
    %v545 = vpop.f32.mrf.mxu0
    %546 = vdwg.mxu0
    %547 = vrot.lane.b32.xlu0 %v161, 96
    %v548 = vpop.permute.xlu0 %547
    %v549 = vsel %vm168, %v161, 0
    %v551 = vsel %vm168, %v548, 0
    %553 = vmatprep.subr.mxu0 0.0
    %554 = vmatpush1.xpose.msra.mxu0 0.0
    %555 = vmatprep.subr.mxu0 0.0
    %556 = vmatpush1.xpose.msra.mxu0 0.0
    %557 = vmatprep.subr.mxu0 0.0
    %558 = vmatpush1.xpose.msra.mxu0 0.0
    %559 = vmatprep.subr.mxu0 0.0
    %560 = vmatpush1.xpose.msra.mxu0 0.0
    %561 = vmatprep.subr.mxu0 0.0
    %562 = vmatpush1.xpose.msra.mxu0 0.0
    %563 = vmatprep.subr.mxu0 0.0
    %564 = vmatpush1.xpose.msra.mxu0 0.0
    %565 = vmatprep.subr.mxu0 0.0
    %566 = vmatpush1.xpose.msra.mxu0 0.0
    %567 = vmatprep.subr.mxu0 0.0
    %568 = vmatpush1.xpose.msra.mxu0 0.0
    %569 = vmatprep.subr.mxu0 0.0
    %570 = vmatpush1.xpose.msra.mxu0 0.0
    %571 = vmatprep.subr.mxu0 0.0
    %572 = vmatpush1.xpose.msra.mxu0 0.0
    %573 = vmatprep.subr.mxu0 0.0
    %574 = vmatpush1.xpose.msra.mxu0 0.0
    %575 = vmatprep.subr.mxu0 0.0
    %576 = vmatpush1.xpose.msra.mxu0 0.0
    %577 = vmatprep.subr.mxu0 0.0
    %578 = vmatpush1.xpose.msra.mxu0 0.0
    %579 = vmatprep.subr.mxu0 0.0
    %580 = vmatpush1.xpose.msra.mxu0 0.0
    %581 = vmatprep.subr.mxu0 0.0
    %582 = vmatpush1.xpose.msra.mxu0 0.0
    %583 = vmatprep.subr.mxu0 0.0
    %584 = vmatpush1.xpose.msra.mxu0 %v551
    %585 = vmatprep.subr.mxu0 0.0
    %586 = vmatpush2.xpose.msra.mxu0 0.0
    %587 = vmatprep.subr.mxu0 0.0
    %588 = vmatpush2.xpose.msra.mxu0 0.0
    %589 = vmatprep.subr.mxu0 0.0
    %590 = vmatpush2.xpose.msra.mxu0 0.0
    %591 = vmatprep.subr.mxu0 0.0
    %592 = vmatpush2.xpose.msra.mxu0 0.0
    %593 = vmatprep.subr.mxu0 0.0
    %594 = vmatpush2.xpose.msra.mxu0 0.0
    %595 = vmatprep.subr.mxu0 0.0
    %596 = vmatpush2.xpose.msra.mxu0 0.0
    %597 = vmatprep.subr.mxu0 0.0
    %598 = vmatpush2.xpose.msra.mxu0 0.0
    %599 = vmatprep.subr.mxu0 0.0
    %600 = vmatpush2.xpose.msra.mxu0 0.0
    %601 = vmatprep.subr.mxu0 0.0
    %602 = vmatpush2.xpose.msra.mxu0 0.0
    %603 = vmatprep.subr.mxu0 0.0
    %604 = vmatpush2.xpose.msra.mxu0 0.0
    %605 = vmatprep.subr.mxu0 0.0
    %606 = vmatpush2.xpose.msra.mxu0 0.0
    %607 = vmatprep.subr.mxu0 0.0
    %608 = vmatpush2.xpose.msra.mxu0 0.0
    %609 = vmatprep.subr.mxu0 0.0
    %610 = vmatpush2.xpose.msra.mxu0 0.0
    %611 = vmatprep.subr.mxu0 0.0
    %612 = vmatpush2.xpose.msra.mxu0 0.0
    %613 = vmatprep.subr.mxu0 0.0
    %614 = vmatpush2.xpose.msra.mxu0 0.0
    %615 = vmatprep.subr.mxu0 0.0
    %616 = vmatpush2.xpose.msra.mxu0 0.0
    %617 = vmatprep.mubr.f32.mxu0 0.0
    %618 = vmatmul.mubr.f32.gmra.mxu0 %v549
    %v619 = vpop.f32.mrf.mxu0
    %v620 = vadd.f32 0.0, %v619
    %v621 = vpop.f32.mrf.mxu0
    %622 = vdwg.mxu0
    %623 = vrot.lane.b32.xlu0 %v163, 96
    %v624 = vpop.permute.xlu0 %623
    %v625 = vsel %vm168, %v163, 0
    %v627 = vsel %vm168, %v624, 0
    %629 = vmatprep.subr.mxu0 0.0
    %630 = vmatpush1.xpose.msra.mxu0 0.0
    %631 = vmatprep.subr.mxu0 0.0
    %632 = vmatpush1.xpose.msra.mxu0 0.0
    %633 = vmatprep.subr.mxu0 0.0
    %634 = vmatpush1.xpose.msra.mxu0 0.0
    %635 = vmatprep.subr.mxu0 0.0
    %636 = vmatpush1.xpose.msra.mxu0 0.0
    %637 = vmatprep.subr.mxu0 0.0
    %638 = vmatpush1.xpose.msra.mxu0 0.0
    %639 = vmatprep.subr.mxu0 0.0
    %640 = vmatpush1.xpose.msra.mxu0 0.0
    %641 = vmatprep.subr.mxu0 0.0
    %642 = vmatpush1.xpose.msra.mxu0 0.0
    %643 = vmatprep.subr.mxu0 0.0
    %644 = vmatpush1.xpose.msra.mxu0 0.0
    %645 = vmatprep.subr.mxu0 0.0
    %646 = vmatpush1.xpose.msra.mxu0 0.0
    %647 = vmatprep.subr.mxu0 0.0
    %648 = vmatpush1.xpose.msra.mxu0 0.0
    %649 = vmatprep.subr.mxu0 0.0
    %650 = vmatpush1.xpose.msra.mxu0 0.0
    %651 = vmatprep.subr.mxu0 0.0
    %652 = vmatpush1.xpose.msra.mxu0 0.0
    %653 = vmatprep.subr.mxu0 0.0
    %654 = vmatpush1.xpose.msra.mxu0 0.0
    %655 = vmatprep.subr.mxu0 0.0
    %656 = vmatpush1.xpose.msra.mxu0 0.0
    %657 = vmatprep.subr.mxu0 0.0
    %658 = vmatpush1.xpose.msra.mxu0 0.0
    %659 = vmatprep.subr.mxu0 0.0
    %660 = vmatpush1.xpose.msra.mxu0 %v627
    %661 = vmatprep.subr.mxu0 0.0
    %662 = vmatpush2.xpose.msra.mxu0 0.0
    %663 = vmatprep.subr.mxu0 0.0
    %664 = vmatpush2.xpose.msra.mxu0 0.0
    %665 = vmatprep.subr.mxu0 0.0
    %666 = vmatpush2.xpose.msra.mxu0 0.0
    %667 = vmatprep.subr.mxu0 0.0
    %668 = vmatpush2.xpose.msra.mxu0 0.0
    %669 = vmatprep.subr.mxu0 0.0
    %670 = vmatpush2.xpose.msra.mxu0 0.0
    %671 = vmatprep.subr.mxu0 0.0
    %672 = vmatpush2.xpose.msra.mxu0 0.0
    %673 = vmatprep.subr.mxu0 0.0
    %674 = vmatpush2.xpose.msra.mxu0 0.0
    %675 = vmatprep.subr.mxu0 0.0
    %676 = vmatpush2.xpose.msra.mxu0 0.0
    %677 = vmatprep.subr.mxu0 0.0
    %678 = vmatpush2.xpose.msra.mxu0 0.0
    %679 = vmatprep.subr.mxu0 0.0
    %680 = vmatpush2.xpose.msra.mxu0 0.0
    %681 = vmatprep.subr.mxu0 0.0
    %682 = vmatpush2.xpose.msra.mxu0 0.0
    %683 = vmatprep.subr.mxu0 0.0
    %684 = vmatpush2.xpose.msra.mxu0 0.0
    %685 = vmatprep.subr.mxu0 0.0
    %686 = vmatpush2.xpose.msra.mxu0 0.0
    %687 = vmatprep.subr.mxu0 0.0
    %688 = vmatpush2.xpose.msra.mxu0 0.0
    %689 = vmatprep.subr.mxu0 0.0
    %690 = vmatpush2.xpose.msra.mxu0 0.0
    %691 = vmatprep.subr.mxu0 0.0
    %692 = vmatpush2.xpose.msra.mxu0 0.0
    %693 = vmatprep.mubr.f32.mxu0 0.0
    %694 = vmatmul.mubr.f32.gmra.mxu0 %v625
    %v695 = vpop.f32.mrf.mxu0
    %v696 = vadd.f32 0.0, %v695
    %v697 = vpop.f32.mrf.mxu0
    %698 = vdwg.mxu0
    %699 = vrot.lane.b32.xlu0 %v165, 96
    %v700 = vpop.permute.xlu0 %699
    %v701 = vsel %vm168, %v165, 0
    %v703 = vsel %vm168, %v700, 0
    %705 = vmatprep.subr.mxu0 0.0
    %706 = vmatpush1.xpose.msra.mxu0 0.0
    %707 = vmatprep.subr.mxu0 0.0
    %708 = vmatpush1.xpose.msra.mxu0 0.0
    %709 = vmatprep.subr.mxu0 0.0
    %710 = vmatpush1.xpose.msra.mxu0 0.0
    %711 = vmatprep.subr.mxu0 0.0
    %712 = vmatpush1.xpose.msra.mxu0 0.0
    %713 = vmatprep.subr.mxu0 0.0
    %714 = vmatpush1.xpose.msra.mxu0 0.0
    %715 = vmatprep.subr.mxu0 0.0
    %716 = vmatpush1.xpose.msra.mxu0 0.0
    %717 = vmatprep.subr.mxu0 0.0
    %718 = vmatpush1.xpose.msra.mxu0 0.0
    %719 = vmatprep.subr.mxu0 0.0
    %720 = vmatpush1.xpose.msra.mxu0 0.0
    %721 = vmatprep.subr.mxu0 0.0
    %722 = vmatpush1.xpose.msra.mxu0 0.0
    %723 = vmatprep.subr.mxu0 0.0
    %724 = vmatpush1.xpose.msra.mxu0 0.0
    %725 = vmatprep.subr.mxu0 0.0
    %726 = vmatpush1.xpose.msra.mxu0 0.0
    %727 = vmatprep.subr.mxu0 0.0
    %728 = vmatpush1.xpose.msra.mxu0 0.0
    %729 = vmatprep.subr.mxu0 0.0
    %730 = vmatpush1.xpose.msra.mxu0 0.0
    %731 = vmatprep.subr.mxu0 0.0
    %732 = vmatpush1.xpose.msra.mxu0 0.0
    %733 = vmatprep.subr.mxu0 0.0
    %734 = vmatpush1.xpose.msra.mxu0 0.0
    %735 = vmatprep.subr.mxu0 0.0
    %736 = vmatpush1.xpose.msra.mxu0 %v703
    %737 = vmatprep.subr.mxu0 0.0
    %738 = vmatpush2.xpose.msra.mxu0 0.0
    %739 = vmatprep.subr.mxu0 0.0
    %740 = vmatpush2.xpose.msra.mxu0 0.0
    %741 = vmatprep.subr.mxu0 0.0
    %742 = vmatpush2.xpose.msra.mxu0 0.0
    %743 = vmatprep.subr.mxu0 0.0
    %744 = vmatpush2.xpose.msra.mxu0 0.0
    %745 = vmatprep.subr.mxu0 0.0
    %746 = vmatpush2.xpose.msra.mxu0 0.0
    %747 = vmatprep.subr.mxu0 0.0
    %748 = vmatpush2.xpose.msra.mxu0 0.0
    %749 = vmatprep.subr.mxu0 0.0
    %750 = vmatpush2.xpose.msra.mxu0 0.0
    %751 = vmatprep.subr.mxu0 0.0
    %752 = vmatpush2.xpose.msra.mxu0 0.0
    %753 = vmatprep.subr.mxu0 0.0
    %754 = vmatpush2.xpose.msra.mxu0 0.0
    %755 = vmatprep.subr.mxu0 0.0
    %756 = vmatpush2.xpose.msra.mxu0 0.0
    %757 = vmatprep.subr.mxu0 0.0
    %758 = vmatpush2.xpose.msra.mxu0 0.0
    %759 = vmatprep.subr.mxu0 0.0
    %760 = vmatpush2.xpose.msra.mxu0 0.0
    %761 = vmatprep.subr.mxu0 0.0
    %762 = vmatpush2.xpose.msra.mxu0 0.0
    %763 = vmatprep.subr.mxu0 0.0
    %764 = vmatpush2.xpose.msra.mxu0 0.0
    %765 = vmatprep.subr.mxu0 0.0
    %766 = vmatpush2.xpose.msra.mxu0 0.0
    %767 = vmatprep.subr.mxu0 0.0
    %768 = vmatpush2.xpose.msra.mxu0 0.0
    %769 = vmatprep.mubr.f32.mxu0 0.0
    %770 = vmatmul.mubr.f32.gmra.mxu0 %v701
    %v771 = vpop.f32.mrf.mxu0
    %v772 = vadd.f32 0.0, %v771
    %v773 = vpop.f32.mrf.mxu0
    %774 = vdwg.mxu0
    %v775 = vmul.f32 %v240, 0.35355338
    %v776 = vmul.f32 %v316, 0.35355338
    %v777 = vmul.f32 %v392, 0.35355338
    %v778 = vmul.f32 %v468, 0.35355338
    %v779 = vmul.f32 %v544, 0.35355338
    %v780 = vmul.f32 %v620, 0.35355338
    %v781 = vmul.f32 %v696, 0.35355338
    %v782 = vmul.f32 %v772, 0.35355338
    %v783 = vsel %vm168, %v775, -inf
    %784 = vmax.xlane.f32.xlu0 %v783
    %v785 = vpop.xlane.xlu0 %784
    %v786 = vsel %vm168, %v776, -inf
    %787 = vmax.xlane.f32.xlu0 %v786
    %v788 = vpop.xlane.xlu0 %787
    %v789 = vsel %vm168, %v777, -inf
    %790 = vmax.xlane.f32.xlu0 %v789
    %v791 = vpop.xlane.xlu0 %790
    %v792 = vsel %vm168, %v778, -inf
    %793 = vmax.xlane.f32.xlu0 %v792
    %v794 = vpop.xlane.xlu0 %793
    %v795 = vsel %vm168, %v779, -inf
    %796 = vmax.xlane.f32.xlu0 %v795
    %v797 = vpop.xlane.xlu0 %796
    %v798 = vsel %vm168, %v780, -inf
    %799 = vmax.xlane.f32.xlu0 %v798
    %v800 = vpop.xlane.xlu0 %799
    %v801 = vsel %vm168, %v781, -inf
    %802 = vmax.xlane.f32.xlu0 %v801
    %v803 = vpop.xlane.xlu0 %802
    %v804 = vsel %vm168, %v782, -inf
    %805 = vmax.xlane.f32.xlu0 %v804
    %v806 = vpop.xlane.xlu0 %805
    %v807 = vsub.f32 %v775, %v785
    %v808 = vsub.f32 %v776, %v788
    %v809 = vsub.f32 %v777, %v791
    %v810 = vsub.f32 %v778, %v794
    %v811 = vsub.f32 %v779, %v797
    %v812 = vsub.f32 %v780, %v800
    %v813 = vsub.f32 %v781, %v803
    %v814 = vsub.f32 %v782, %v806
    %v815 = vmul.f32 %v807, 1.442695
    %v816 = vpow.pop %v815
    %v817 = vmul.f32 %v808, 1.442695
    %v818 = vpow.pop %v817
    %v819 = vmul.f32 %v809, 1.442695
    %v820 = vpow.pop %v819
    %v821 = vmul.f32 %v810, 1.442695
    %v822 = vpow.pop %v821
    %v823 = vmul.f32 %v811, 1.442695
    %v824 = vpow.pop %v823
    %v825 = vmul.f32 %v812, 1.442695
    %v826 = vpow.pop %v825
    %v827 = vmul.f32 %v813, 1.442695
    %v828 = vpow.pop %v827
    %v829 = vmul.f32 %v814, 1.442695
    %v830 = vpow.pop %v829
    %v831 = vsel %vm168, %v816, 0.0
    %832 = vadd.xlane.f32.xlu0 %v831
    %v833 = vpop.xlane.xlu0 %832
    %v834 = vsel %vm168, %v818, 0.0
    %835 = vadd.xlane.f32.xlu0 %v834
    %v836 = vpop.xlane.xlu0 %835
    %v837 = vsel %vm168, %v820, 0.0
    %838 = vadd.xlane.f32.xlu0 %v837
    %v839 = vpop.xlane.xlu0 %838
    %v840 = vsel %vm168, %v822, 0.0
    %841 = vadd.xlane.f32.xlu0 %v840
    %v842 = vpop.xlane.xlu0 %841
    %v843 = vsel %vm168, %v824, 0.0
    %844 = vadd.xlane.f32.xlu0 %v843
    %v845 = vpop.xlane.xlu0 %844
    %v846 = vsel %vm168, %v826, 0.0
    %847 = vadd.xlane.f32.xlu0 %v846
    %v848 = vpop.xlane.xlu0 %847
    %v849 = vsel %vm168, %v828, 0.0
    %850 = vadd.xlane.f32.xlu0 %v849
    %v851 = vpop.xlane.xlu0 %850
    %v852 = vsel %vm168, %v830, 0.0
    %853 = vadd.xlane.f32.xlu0 %v852
    %v854 = vpop.xlane.xlu0 %853
    %v855 = vrcp.pop %v833
    %v856 = vmul.f32 %v816, %v855
    %v857 = vrcp.pop %v836
    %v858 = vmul.f32 %v818, %v857
    %v859 = vrcp.pop %v839
    %v860 = vmul.f32 %v820, %v859
    %v861 = vrcp.pop %v842
    %v862 = vmul.f32 %v822, %v861
    %v863 = vrcp.pop %v845
    %v864 = vmul.f32 %v824, %v863
    %v865 = vrcp.pop %v848
    %v866 = vmul.f32 %v826, %v865
    %v867 = vrcp.pop %v851
    %v868 = vmul.f32 %v828, %v867
    %v869 = vrcp.pop %v854
    %v870 = vmul.f32 %v830, %v869
    %871 = vrot.lane.b32.xlu0 %v144, 64
    %v872 = vpop.permute.xlu0 %871
    %v875 = vsel %vm168, %v856, 0
    %877 = vmatprep.subr.mxu0 0.0
    %878 = vmatpush1.msra.mxu0 0.0
    %879 = vmatprep.subr.mxu0 0.0
    %880 = vmatpush1.msra.mxu0 0.0
    %881 = vmatprep.subr.mxu0 0.0
    %882 = vmatpush1.msra.mxu0 0.0
    %883 = vmatprep.subr.mxu0 0.0
    %884 = vmatpush1.msra.mxu0 0.0
    %885 = vmatprep.subr.mxu0 0.0
    %886 = vmatpush1.msra.mxu0 0.0
    %887 = vmatprep.subr.mxu0 0.0
    %888 = vmatpush1.msra.mxu0 0.0
    %889 = vmatprep.subr.mxu0 0.0
    %890 = vmatpush1.msra.mxu0 0.0
    %891 = vmatprep.subr.mxu0 0.0
    %892 = vmatpush1.msra.mxu0 0.0
    %893 = vmatprep.subr.mxu0 0.0
    %894 = vmatpush1.msra.mxu0 0.0
    %895 = vmatprep.subr.mxu0 0.0
    %896 = vmatpush1.msra.mxu0 0.0
    %897 = vmatprep.subr.mxu0 0.0
    %898 = vmatpush1.msra.mxu0 0.0
    %899 = vmatprep.subr.mxu0 0.0
    %900 = vmatpush1.msra.mxu0 0.0
    %901 = vmatprep.subr.mxu0 0.0
    %902 = vmatpush1.msra.mxu0 0.0
    %903 = vmatprep.subr.mxu0 0.0
    %904 = vmatpush1.msra.mxu0 0.0
    %905 = vmatprep.subr.mxu0 0.0
    %906 = vmatpush1.msra.mxu0 0.0
    %907 = vmatprep.subr.mxu0 0.0
    %908 = vmatpush1.msra.mxu0 %v872
    %909 = vmatprep.subr.mxu0 0.0
    %910 = vmatpush2.msra.mxu0 0.0
    %911 = vmatprep.subr.mxu0 0.0
    %912 = vmatpush2.msra.mxu0 0.0
    %913 = vmatprep.subr.mxu0 0.0
    %914 = vmatpush2.msra.mxu0 0.0
    %915 = vmatprep.subr.mxu0 0.0
    %916 = vmatpush2.msra.mxu0 0.0
    %917 = vmatprep.subr.mxu0 0.0
    %918 = vmatpush2.msra.mxu0 0.0
    %919 = vmatprep.subr.mxu0 0.0
    %920 = vmatpush2.msra.mxu0 0.0
    %921 = vmatprep.subr.mxu0 0.0
    %922 = vmatpush2.msra.mxu0 0.0
    %923 = vmatprep.subr.mxu0 0.0
    %924 = vmatpush2.msra.mxu0 0.0
    %925 = vmatprep.subr.mxu0 0.0
    %926 = vmatpush2.msra.mxu0 0.0
    %927 = vmatprep.subr.mxu0 0.0
    %928 = vmatpush2.msra.mxu0 0.0
    %929 = vmatprep.subr.mxu0 0.0
    %930 = vmatpush2.msra.mxu0 0.0
    %931 = vmatprep.subr.mxu0 0.0
    %932 = vmatpush2.msra.mxu0 0.0
    %933 = vmatprep.subr.mxu0 0.0
    %934 = vmatpush2.msra.mxu0 0.0
    %935 = vmatprep.subr.mxu0 0.0
    %936 = vmatpush2.msra.mxu0 0.0
    %937 = vmatprep.subr.mxu0 0.0
    %938 = vmatpush2.msra.mxu0 0.0
    %939 = vmatprep.subr.mxu0 0.0
    %940 = vmatpush2.msra.mxu0 0.0
    %941 = vmatprep.mubr.f32.mxu0 0.0
    %942 = vmatmul.mubr.f32.gmra.mxu0 %v875
    %v943 = vpop.f32.mrf.mxu0
    %v944 = vadd.f32 0.0, %v943
    %v945 = vpop.f32.mrf.mxu0
    %946 = vdwg.mxu0
    %947 = vrot.lane.b32.xlu0 %v154, 64
    %v948 = vpop.permute.xlu0 %947
    %v951 = vsel %vm168, %v858, 0
    %953 = vmatprep.subr.mxu0 0.0
    %954 = vmatpush1.msra.mxu0 0.0
    %955 = vmatprep.subr.mxu0 0.0
    %956 = vmatpush1.msra.mxu0 0.0
    %957 = vmatprep.subr.mxu0 0.0
    %958 = vmatpush1.msra.mxu0 0.0
    %959 = vmatprep.subr.mxu0 0.0
    %960 = vmatpush1.msra.mxu0 0.0
    %961 = vmatprep.subr.mxu0 0.0
    %962 = vmatpush1.msra.mxu0 0.0
    %963 = vmatprep.subr.mxu0 0.0
    %964 = vmatpush1.msra.mxu0 0.0
    %965 = vmatprep.subr.mxu0 0.0
    %966 = vmatpush1.msra.mxu0 0.0
    %967 = vmatprep.subr.mxu0 0.0
    %968 = vmatpush1.msra.mxu0 0.0
    %969 = vmatprep.subr.mxu0 0.0
    %970 = vmatpush1.msra.mxu0 0.0
    %971 = vmatprep.subr.mxu0 0.0
    %972 = vmatpush1.msra.mxu0 0.0
    %973 = vmatprep.subr.mxu0 0.0
    %974 = vmatpush1.msra.mxu0 0.0
    %975 = vmatprep.subr.mxu0 0.0
    %976 = vmatpush1.msra.mxu0 0.0
    %977 = vmatprep.subr.mxu0 0.0
    %978 = vmatpush1.msra.mxu0 0.0
    %979 = vmatprep.subr.mxu0 0.0
    %980 = vmatpush1.msra.mxu0 0.0
    %981 = vmatprep.subr.mxu0 0.0
    %982 = vmatpush1.msra.mxu0 0.0
    %983 = vmatprep.subr.mxu0 0.0
    %984 = vmatpush1.msra.mxu0 %v948
    %985 = vmatprep.subr.mxu0 0.0
    %986 = vmatpush2.msra.mxu0 0.0
    %987 = vmatprep.subr.mxu0 0.0
    %988 = vmatpush2.msra.mxu0 0.0
    %989 = vmatprep.subr.mxu0 0.0
    %990 = vmatpush2.msra.mxu0 0.0
    %991 = vmatprep.subr.mxu0 0.0
    %992 = vmatpush2.msra.mxu0 0.0
    %993 = vmatprep.subr.mxu0 0.0
    %994 = vmatpush2.msra.mxu0 0.0
    %995 = vmatprep.subr.mxu0 0.0
    %996 = vmatpush2.msra.mxu0 0.0
    %997 = vmatprep.subr.mxu0 0.0
    %998 = vmatpush2.msra.mxu0 0.0
    %999 = vmatprep.subr.mxu0 0.0
    %1000 = vmatpush2.msra.mxu0 0.0
    %1001 = vmatprep.subr.mxu0 0.0
    %1002 = vmatpush2.msra.mxu0 0.0
    %1003 = vmatprep.subr.mxu0 0.0
    %1004 = vmatpush2.msra.mxu0 0.0
    %1005 = vmatprep.subr.mxu0 0.0
    %1006 = vmatpush2.msra.mxu0 0.0
    %1007 = vmatprep.subr.mxu0 0.0
    %1008 = vmatpush2.msra.mxu0 0.0
    %1009 = vmatprep.subr.mxu0 0.0
    %1010 = vmatpush2.msra.mxu0 0.0
    %1011 = vmatprep.subr.mxu0 0.0
    %1012 = vmatpush2.msra.mxu0 0.0
    %1013 = vmatprep.subr.mxu0 0.0
    %1014 = vmatpush2.msra.mxu0 0.0
    %1015 = vmatprep.subr.mxu0 0.0
    %1016 = vmatpush2.msra.mxu0 0.0
    %1017 = vmatprep.mubr.f32.mxu0 0.0
    %1018 = vmatmul.mubr.f32.gmra.mxu0 %v951
    %v1019 = vpop.f32.mrf.mxu0
    %v1020 = vadd.f32 0.0, %v1019
    %v1021 = vpop.f32.mrf.mxu0
    %1022 = vdwg.mxu0
    %1023 = vrot.lane.b32.xlu0 %v156, 64
    %v1024 = vpop.permute.xlu0 %1023
    %v1027 = vsel %vm168, %v860, 0
    %1029 = vmatprep.subr.mxu0 0.0
    %1030 = vmatpush1.msra.mxu0 0.0
    %1031 = vmatprep.subr.mxu0 0.0
    %1032 = vmatpush1.msra.mxu0 0.0
    %1033 = vmatprep.subr.mxu0 0.0
    %1034 = vmatpush1.msra.mxu0 0.0
    %1035 = vmatprep.subr.mxu0 0.0
    %1036 = vmatpush1.msra.mxu0 0.0
    %1037 = vmatprep.subr.mxu0 0.0
    %1038 = vmatpush1.msra.mxu0 0.0
    %1039 = vmatprep.subr.mxu0 0.0
    %1040 = vmatpush1.msra.mxu0 0.0
    %1041 = vmatprep.subr.mxu0 0.0
    %1042 = vmatpush1.msra.mxu0 0.0
    %1043 = vmatprep.subr.mxu0 0.0
    %1044 = vmatpush1.msra.mxu0 0.0
    %1045 = vmatprep.subr.mxu0 0.0
    %1046 = vmatpush1.msra.mxu0 0.0
    %1047 = vmatprep.subr.mxu0 0.0
    %1048 = vmatpush1.msra.mxu0 0.0
    %1049 = vmatprep.subr.mxu0 0.0
    %1050 = vmatpush1.msra.mxu0 0.0
    %1051 = vmatprep.subr.mxu0 0.0
    %1052 = vmatpush1.msra.mxu0 0.0
    %1053 = vmatprep.subr.mxu0 0.0
    %1054 = vmatpush1.msra.mxu0 0.0
    %1055 = vmatprep.subr.mxu0 0.0
    %1056 = vmatpush1.msra.mxu0 0.0
    %1057 = vmatprep.subr.mxu0 0.0
    %1058 = vmatpush1.msra.mxu0 0.0
    %1059 = vmatprep.subr.mxu0 0.0
    %1060 = vmatpush1.msra.mxu0 %v1024
    %1061 = vmatprep.subr.mxu0 0.0
    %1062 = vmatpush2.msra.mxu0 0.0
    %1063 = vmatprep.subr.mxu0 0.0
    %1064 = vmatpush2.msra.mxu0 0.0
    %1065 = vmatprep.subr.mxu0 0.0
    %1066 = vmatpush2.msra.mxu0 0.0
    %1067 = vmatprep.subr.mxu0 0.0
    %1068 = vmatpush2.msra.mxu0 0.0
    %1069 = vmatprep.subr.mxu0 0.0
    %1070 = vmatpush2.msra.mxu0 0.0
    %1071 = vmatprep.subr.mxu0 0.0
    %1072 = vmatpush2.msra.mxu0 0.0
    %1073 = vmatprep.subr.mxu0 0.0
    %1074 = vmatpush2.msra.mxu0 0.0
    %1075 = vmatprep.subr.mxu0 0.0
    %1076 = vmatpush2.msra.mxu0 0.0
    %1077 = vmatprep.subr.mxu0 0.0
    %1078 = vmatpush2.msra.mxu0 0.0
    %1079 = vmatprep.subr.mxu0 0.0
    %1080 = vmatpush2.msra.mxu0 0.0
    %1081 = vmatprep.subr.mxu0 0.0
    %1082 = vmatpush2.msra.mxu0 0.0
    %1083 = vmatprep.subr.mxu0 0.0
    %1084 = vmatpush2.msra.mxu0 0.0
    %1085 = vmatprep.subr.mxu0 0.0
    %1086 = vmatpush2.msra.mxu0 0.0
    %1087 = vmatprep.subr.mxu0 0.0
    %1088 = vmatpush2.msra.mxu0 0.0
    %1089 = vmatprep.subr.mxu0 0.0
    %1090 = vmatpush2.msra.mxu0 0.0
    %1091 = vmatprep.subr.mxu0 0.0
    %1092 = vmatpush2.msra.mxu0 0.0
    %1093 = vmatprep.mubr.f32.mxu0 0.0
    %1094 = vmatmul.mubr.f32.gmra.mxu0 %v1027
    %v1095 = vpop.f32.mrf.mxu0
    %v1096 = vadd.f32 0.0, %v1095
    %v1097 = vpop.f32.mrf.mxu0
    %1098 = vdwg.mxu0
    %1099 = vrot.lane.b32.xlu0 %v158, 64
    %v1100 = vpop.permute.xlu0 %1099
    %v1103 = vsel %vm168, %v862, 0
    %1105 = vmatprep.subr.mxu0 0.0
    %1106 = vmatpush1.msra.mxu0 0.0
    %1107 = vmatprep.subr.mxu0 0.0
    %1108 = vmatpush1.msra.mxu0 0.0
    %1109 = vmatprep.subr.mxu0 0.0
    %1110 = vmatpush1.msra.mxu0 0.0
    %1111 = vmatprep.subr.mxu0 0.0
    %1112 = vmatpush1.msra.mxu0 0.0
    %1113 = vmatprep.subr.mxu0 0.0
    %1114 = vmatpush1.msra.mxu0 0.0
    %1115 = vmatprep.subr.mxu0 0.0
    %1116 = vmatpush1.msra.mxu0 0.0
    %1117 = vmatprep.subr.mxu0 0.0
    %1118 = vmatpush1.msra.mxu0 0.0
    %1119 = vmatprep.subr.mxu0 0.0
    %1120 = vmatpush1.msra.mxu0 0.0
    %1121 = vmatprep.subr.mxu0 0.0
    %1122 = vmatpush1.msra.mxu0 0.0
    %1123 = vmatprep.subr.mxu0 0.0
    %1124 = vmatpush1.msra.mxu0 0.0
    %1125 = vmatprep.subr.mxu0 0.0
    %1126 = vmatpush1.msra.mxu0 0.0
    %1127 = vmatprep.subr.mxu0 0.0
    %1128 = vmatpush1.msra.mxu0 0.0
    %1129 = vmatprep.subr.mxu0 0.0
    %1130 = vmatpush1.msra.mxu0 0.0
    %1131 = vmatprep.subr.mxu0 0.0
    %1132 = vmatpush1.msra.mxu0 0.0
    %1133 = vmatprep.subr.mxu0 0.0
    %1134 = vmatpush1.msra.mxu0 0.0
    %1135 = vmatprep.subr.mxu0 0.0
    %1136 = vmatpush1.msra.mxu0 %v1100
    %1137 = vmatprep.subr.mxu0 0.0
    %1138 = vmatpush2.msra.mxu0 0.0
    %1139 = vmatprep.subr.mxu0 0.0
    %1140 = vmatpush2.msra.mxu0 0.0
    %1141 = vmatprep.subr.mxu0 0.0
    %1142 = vmatpush2.msra.mxu0 0.0
    %1143 = vmatprep.subr.mxu0 0.0
    %1144 = vmatpush2.msra.mxu0 0.0
    %1145 = vmatprep.subr.mxu0 0.0
    %1146 = vmatpush2.msra.mxu0 0.0
    %1147 = vmatprep.subr.mxu0 0.0
    %1148 = vmatpush2.msra.mxu0 0.0
    %1149 = vmatprep.subr.mxu0 0.0
    %1150 = vmatpush2.msra.mxu0 0.0
    %1151 = vmatprep.subr.mxu0 0.0
    %1152 = vmatpush2.msra.mxu0 0.0
    %1153 = vmatprep.subr.mxu0 0.0
    %1154 = vmatpush2.msra.mxu0 0.0
    %1155 = vmatprep.subr.mxu0 0.0
    %1156 = vmatpush2.msra.mxu0 0.0
    %1157 = vmatprep.subr.mxu0 0.0
    %1158 = vmatpush2.msra.mxu0 0.0
    %1159 = vmatprep.subr.mxu0 0.0
    %1160 = vmatpush2.msra.mxu0 0.0
    %1161 = vmatprep.subr.mxu0 0.0
    %1162 = vmatpush2.msra.mxu0 0.0
    %1163 = vmatprep.subr.mxu0 0.0
    %1164 = vmatpush2.msra.mxu0 0.0
    %1165 = vmatprep.subr.mxu0 0.0
    %1166 = vmatpush2.msra.mxu0 0.0
    %1167 = vmatprep.subr.mxu0 0.0
    %1168 = vmatpush2.msra.mxu0 0.0
    %1169 = vmatprep.mubr.f32.mxu0 0.0
    %1170 = vmatmul.mubr.f32.gmra.mxu0 %v1103
    %v1171 = vpop.f32.mrf.mxu0
    %v1172 = vadd.f32 0.0, %v1171
    %v1173 = vpop.f32.mrf.mxu0
    %1174 = vdwg.mxu0
    %1175 = vrot.lane.b32.xlu0 %v149, 64
    %v1176 = vpop.permute.xlu0 %1175
    %v1179 = vsel %vm168, %v864, 0
    %1181 = vmatprep.subr.mxu0 0.0
    %1182 = vmatpush1.msra.mxu0 0.0
    %1183 = vmatprep.subr.mxu0 0.0
    %1184 = vmatpush1.msra.mxu0 0.0
    %1185 = vmatprep.subr.mxu0 0.0
    %1186 = vmatpush1.msra.mxu0 0.0
    %1187 = vmatprep.subr.mxu0 0.0
    %1188 = vmatpush1.msra.mxu0 0.0
    %1189 = vmatprep.subr.mxu0 0.0
    %1190 = vmatpush1.msra.mxu0 0.0
    %1191 = vmatprep.subr.mxu0 0.0
    %1192 = vmatpush1.msra.mxu0 0.0
    %1193 = vmatprep.subr.mxu0 0.0
    %1194 = vmatpush1.msra.mxu0 0.0
    %1195 = vmatprep.subr.mxu0 0.0
    %1196 = vmatpush1.msra.mxu0 0.0
    %1197 = vmatprep.subr.mxu0 0.0
    %1198 = vmatpush1.msra.mxu0 0.0
    %1199 = vmatprep.subr.mxu0 0.0
    %1200 = vmatpush1.msra.mxu0 0.0
    %1201 = vmatprep.subr.mxu0 0.0
    %1202 = vmatpush1.msra.mxu0 0.0
    %1203 = vmatprep.subr.mxu0 0.0
    %1204 = vmatpush1.msra.mxu0 0.0
    %1205 = vmatprep.subr.mxu0 0.0
    %1206 = vmatpush1.msra.mxu0 0.0
    %1207 = vmatprep.subr.mxu0 0.0
    %1208 = vmatpush1.msra.mxu0 0.0
    %1209 = vmatprep.subr.mxu0 0.0
    %1210 = vmatpush1.msra.mxu0 0.0
    %1211 = vmatprep.subr.mxu0 0.0
    %1212 = vmatpush1.msra.mxu0 %v1176
    %1213 = vmatprep.subr.mxu0 0.0
    %1214 = vmatpush2.msra.mxu0 0.0
    %1215 = vmatprep.subr.mxu0 0.0
    %1216 = vmatpush2.msra.mxu0 0.0
    %1217 = vmatprep.subr.mxu0 0.0
    %1218 = vmatpush2.msra.mxu0 0.0
    %1219 = vmatprep.subr.mxu0 0.0
    %1220 = vmatpush2.msra.mxu0 0.0
    %1221 = vmatprep.subr.mxu0 0.0
    %1222 = vmatpush2.msra.mxu0 0.0
    %1223 = vmatprep.subr.mxu0 0.0
    %1224 = vmatpush2.msra.mxu0 0.0
    %1225 = vmatprep.subr.mxu0 0.0
    %1226 = vmatpush2.msra.mxu0 0.0
    %1227 = vmatprep.subr.mxu0 0.0
    %1228 = vmatpush2.msra.mxu0 0.0
    %1229 = vmatprep.subr.mxu0 0.0
    %1230 = vmatpush2.msra.mxu0 0.0
    %1231 = vmatprep.subr.mxu0 0.0
    %1232 = vmatpush2.msra.mxu0 0.0
    %1233 = vmatprep.subr.mxu0 0.0
    %1234 = vmatpush2.msra.mxu0 0.0
    %1235 = vmatprep.subr.mxu0 0.0
    %1236 = vmatpush2.msra.mxu0 0.0
    %1237 = vmatprep.subr.mxu0 0.0
    %1238 = vmatpush2.msra.mxu0 0.0
    %1239 = vmatprep.subr.mxu0 0.0
    %1240 = vmatpush2.msra.mxu0 0.0
    %1241 = vmatprep.subr.mxu0 0.0
    %1242 = vmatpush2.msra.mxu0 0.0
    %1243 = vmatprep.subr.mxu0 0.0
    %1244 = vmatpush2.msra.mxu0 0.0
    %1245 = vmatprep.mubr.f32.mxu0 0.0
    %1246 = vmatmul.mubr.f32.gmra.mxu0 %v1179
    %v1247 = vpop.f32.mrf.mxu0
    %v1248 = vadd.f32 0.0, %v1247
    %v1249 = vpop.f32.mrf.mxu0
    %1250 = vdwg.mxu0
    %1251 = vrot.lane.b32.xlu0 %v161, 64
    %v1252 = vpop.permute.xlu0 %1251
    %v1255 = vsel %vm168, %v866, 0
    %1257 = vmatprep.subr.mxu0 0.0
    %1258 = vmatpush1.msra.mxu0 0.0
    %1259 = vmatprep.subr.mxu0 0.0
    %1260 = vmatpush1.msra.mxu0 0.0
    %1261 = vmatprep.subr.mxu0 0.0
    %1262 = vmatpush1.msra.mxu0 0.0
    %1263 = vmatprep.subr.mxu0 0.0
    %1264 = vmatpush1.msra.mxu0 0.0
    %1265 = vmatprep.subr.mxu0 0.0
    %1266 = vmatpush1.msra.mxu0 0.0
    %1267 = vmatprep.subr.mxu0 0.0
    %1268 = vmatpush1.msra.mxu0 0.0
    %1269 = vmatprep.subr.mxu0 0.0
    %1270 = vmatpush1.msra.mxu0 0.0
    %1271 = vmatprep.subr.mxu0 0.0
    %1272 = vmatpush1.msra.mxu0 0.0
    %1273 = vmatprep.subr.mxu0 0.0
    %1274 = vmatpush1.msra.mxu0 0.0
    %1275 = vmatprep.subr.mxu0 0.0
    %1276 = vmatpush1.msra.mxu0 0.0
    %1277 = vmatprep.subr.mxu0 0.0
    %1278 = vmatpush1.msra.mxu0 0.0
    %1279 = vmatprep.subr.mxu0 0.0
    %1280 = vmatpush1.msra.mxu0 0.0
    %1281 = vmatprep.subr.mxu0 0.0
    %1282 = vmatpush1.msra.mxu0 0.0
    %1283 = vmatprep.subr.mxu0 0.0
    %1284 = vmatpush1.msra.mxu0 0.0
    %1285 = vmatprep.subr.mxu0 0.0
    %1286 = vmatpush1.msra.mxu0 0.0
    %1287 = vmatprep.subr.mxu0 0.0
    %1288 = vmatpush1.msra.mxu0 %v1252
    %1289 = vmatprep.subr.mxu0 0.0
    %1290 = vmatpush2.msra.mxu0 0.0
    %1291 = vmatprep.subr.mxu0 0.0
    %1292 = vmatpush2.msra.mxu0 0.0
    %1293 = vmatprep.subr.mxu0 0.0
    %1294 = vmatpush2.msra.mxu0 0.0
    %1295 = vmatprep.subr.mxu0 0.0
    %1296 = vmatpush2.msra.mxu0 0.0
    %1297 = vmatprep.subr.mxu0 0.0
    %1298 = vmatpush2.msra.mxu0 0.0
    %1299 = vmatprep.subr.mxu0 0.0
    %1300 = vmatpush2.msra.mxu0 0.0
    %1301 = vmatprep.subr.mxu0 0.0
    %1302 = vmatpush2.msra.mxu0 0.0
    %1303 = vmatprep.subr.mxu0 0.0
    %1304 = vmatpush2.msra.mxu0 0.0
    %1305 = vmatprep.subr.mxu0 0.0
    %1306 = vmatpush2.msra.mxu0 0.0
    %1307 = vmatprep.subr.mxu0 0.0
    %1308 = vmatpush2.msra.mxu0 0.0
    %1309 = vmatprep.subr.mxu0 0.0
    %1310 = vmatpush2.msra.mxu0 0.0
    %1311 = vmatprep.subr.mxu0 0.0
    %1312 = vmatpush2.msra.mxu0 0.0
    %1313 = vmatprep.subr.mxu0 0.0
    %1314 = vmatpush2.msra.mxu0 0.0
    %1315 = vmatprep.subr.mxu0 0.0
    %1316 = vmatpush2.msra.mxu0 0.0
    %1317 = vmatprep.subr.mxu0 0.0
    %1318 = vmatpush2.msra.mxu0 0.0
    %1319 = vmatprep.subr.mxu0 0.0
    %1320 = vmatpush2.msra.mxu0 0.0
    %1321 = vmatprep.mubr.f32.mxu0 0.0
    %1322 = vmatmul.mubr.f32.gmra.mxu0 %v1255
    %v1323 = vpop.f32.mrf.mxu0
    %v1324 = vadd.f32 0.0, %v1323
    %v1325 = vpop.f32.mrf.mxu0
    %1326 = vdwg.mxu0
    %1327 = vrot.lane.b32.xlu0 %v163, 64
    %v1328 = vpop.permute.xlu0 %1327
    %v1331 = vsel %vm168, %v868, 0
    %1333 = vmatprep.subr.mxu0 0.0
    %1334 = vmatpush1.msra.mxu0 0.0
    %1335 = vmatprep.subr.mxu0 0.0
    %1336 = vmatpush1.msra.mxu0 0.0
    %1337 = vmatprep.subr.mxu0 0.0
    %1338 = vmatpush1.msra.mxu0 0.0
    %1339 = vmatprep.subr.mxu0 0.0
    %1340 = vmatpush1.msra.mxu0 0.0
    %1341 = vmatprep.subr.mxu0 0.0
    %1342 = vmatpush1.msra.mxu0 0.0
    %1343 = vmatprep.subr.mxu0 0.0
    %1344 = vmatpush1.msra.mxu0 0.0
    %1345 = vmatprep.subr.mxu0 0.0
    %1346 = vmatpush1.msra.mxu0 0.0
    %1347 = vmatprep.subr.mxu0 0.0
    %1348 = vmatpush1.msra.mxu0 0.0
    %1349 = vmatprep.subr.mxu0 0.0
    %1350 = vmatpush1.msra.mxu0 0.0
    %1351 = vmatprep.subr.mxu0 0.0
    %1352 = vmatpush1.msra.mxu0 0.0
    %1353 = vmatprep.subr.mxu0 0.0
    %1354 = vmatpush1.msra.mxu0 0.0
    %1355 = vmatprep.subr.mxu0 0.0
    %1356 = vmatpush1.msra.mxu0 0.0
    %1357 = vmatprep.subr.mxu0 0.0
    %1358 = vmatpush1.msra.mxu0 0.0
    %1359 = vmatprep.subr.mxu0 0.0
    %1360 = vmatpush1.msra.mxu0 0.0
    %1361 = vmatprep.subr.mxu0 0.0
    %1362 = vmatpush1.msra.mxu0 0.0
    %1363 = vmatprep.subr.mxu0 0.0
    %1364 = vmatpush1.msra.mxu0 %v1328
    %1365 = vmatprep.subr.mxu0 0.0
    %1366 = vmatpush2.msra.mxu0 0.0
    %1367 = vmatprep.subr.mxu0 0.0
    %1368 = vmatpush2.msra.mxu0 0.0
    %1369 = vmatprep.subr.mxu0 0.0
    %1370 = vmatpush2.msra.mxu0 0.0
    %1371 = vmatprep.subr.mxu0 0.0
    %1372 = vmatpush2.msra.mxu0 0.0
    %1373 = vmatprep.subr.mxu0 0.0
    %1374 = vmatpush2.msra.mxu0 0.0
    %1375 = vmatprep.subr.mxu0 0.0
    %1376 = vmatpush2.msra.mxu0 0.0
    %1377 = vmatprep.subr.mxu0 0.0
    %1378 = vmatpush2.msra.mxu0 0.0
    %1379 = vmatprep.subr.mxu0 0.0
    %1380 = vmatpush2.msra.mxu0 0.0
    %1381 = vmatprep.subr.mxu0 0.0
    %1382 = vmatpush2.msra.mxu0 0.0
    %1383 = vmatprep.subr.mxu0 0.0
    %1384 = vmatpush2.msra.mxu0 0.0
    %1385 = vmatprep.subr.mxu0 0.0
    %1386 = vmatpush2.msra.mxu0 0.0
    %1387 = vmatprep.subr.mxu0 0.0
    %1388 = vmatpush2.msra.mxu0 0.0
    %1389 = vmatprep.subr.mxu0 0.0
    %1390 = vmatpush2.msra.mxu0 0.0
    %1391 = vmatprep.subr.mxu0 0.0
    %1392 = vmatpush2.msra.mxu0 0.0
    %1393 = vmatprep.subr.mxu0 0.0
    %1394 = vmatpush2.msra.mxu0 0.0
    %1395 = vmatprep.subr.mxu0 0.0
    %1396 = vmatpush2.msra.mxu0 0.0
    %1397 = vmatprep.mubr.f32.mxu0 0.0
    %1398 = vmatmul.mubr.f32.gmra.mxu0 %v1331
    %v1399 = vpop.f32.mrf.mxu0
    %v1400 = vadd.f32 0.0, %v1399
    %v1401 = vpop.f32.mrf.mxu0
    %1402 = vdwg.mxu0
    %1403 = vrot.lane.b32.xlu0 %v165, 64
    %v1404 = vpop.permute.xlu0 %1403
    %v1407 = vsel %vm168, %v870, 0
    %1409 = vmatprep.subr.mxu0 0.0
    %1410 = vmatpush1.msra.mxu0 0.0
    %1411 = vmatprep.subr.mxu0 0.0
    %1412 = vmatpush1.msra.mxu0 0.0
    %1413 = vmatprep.subr.mxu0 0.0
    %1414 = vmatpush1.msra.mxu0 0.0
    %1415 = vmatprep.subr.mxu0 0.0
    %1416 = vmatpush1.msra.mxu0 0.0
    %1417 = vmatprep.subr.mxu0 0.0
    %1418 = vmatpush1.msra.mxu0 0.0
    %1419 = vmatprep.subr.mxu0 0.0
    %1420 = vmatpush1.msra.mxu0 0.0
    %1421 = vmatprep.subr.mxu0 0.0
    %1422 = vmatpush1.msra.mxu0 0.0
    %1423 = vmatprep.subr.mxu0 0.0
    %1424 = vmatpush1.msra.mxu0 0.0
    %1425 = vmatprep.subr.mxu0 0.0
    %1426 = vmatpush1.msra.mxu0 0.0
    %1427 = vmatprep.subr.mxu0 0.0
    %1428 = vmatpush1.msra.mxu0 0.0
    %1429 = vmatprep.subr.mxu0 0.0
    %1430 = vmatpush1.msra.mxu0 0.0
    %1431 = vmatprep.subr.mxu0 0.0
    %1432 = vmatpush1.msra.mxu0 0.0
    %1433 = vmatprep.subr.mxu0 0.0
    %1434 = vmatpush1.msra.mxu0 0.0
    %1435 = vmatprep.subr.mxu0 0.0
    %1436 = vmatpush1.msra.mxu0 0.0
    %1437 = vmatprep.subr.mxu0 0.0
    %1438 = vmatpush1.msra.mxu0 0.0
    %1439 = vmatprep.subr.mxu0 0.0
    %1440 = vmatpush1.msra.mxu0 %v1404
    %1441 = vmatprep.subr.mxu0 0.0
    %1442 = vmatpush2.msra.mxu0 0.0
    %1443 = vmatprep.subr.mxu0 0.0
    %1444 = vmatpush2.msra.mxu0 0.0
    %1445 = vmatprep.subr.mxu0 0.0
    %1446 = vmatpush2.msra.mxu0 0.0
    %1447 = vmatprep.subr.mxu0 0.0
    %1448 = vmatpush2.msra.mxu0 0.0
    %1449 = vmatprep.subr.mxu0 0.0
    %1450 = vmatpush2.msra.mxu0 0.0
    %1451 = vmatprep.subr.mxu0 0.0
    %1452 = vmatpush2.msra.mxu0 0.0
    %1453 = vmatprep.subr.mxu0 0.0
    %1454 = vmatpush2.msra.mxu0 0.0
    %1455 = vmatprep.subr.mxu0 0.0
    %1456 = vmatpush2.msra.mxu0 0.0
    %1457 = vmatprep.subr.mxu0 0.0
    %1458 = vmatpush2.msra.mxu0 0.0
    %1459 = vmatprep.subr.mxu0 0.0
    %1460 = vmatpush2.msra.mxu0 0.0
    %1461 = vmatprep.subr.mxu0 0.0
    %1462 = vmatpush2.msra.mxu0 0.0
    %1463 = vmatprep.subr.mxu0 0.0
    %1464 = vmatpush2.msra.mxu0 0.0
    %1465 = vmatprep.subr.mxu0 0.0
    %1466 = vmatpush2.msra.mxu0 0.0
    %1467 = vmatprep.subr.mxu0 0.0
    %1468 = vmatpush2.msra.mxu0 0.0
    %1469 = vmatprep.subr.mxu0 0.0
    %1470 = vmatpush2.msra.mxu0 0.0
    %1471 = vmatprep.subr.mxu0 0.0
    %1472 = vmatpush2.msra.mxu0 0.0
    %1473 = vmatprep.mubr.f32.mxu0 0.0
    %1474 = vmatmul.mubr.f32.gmra.mxu0 %v1407
    %v1475 = vpop.f32.mrf.mxu0
    %v1476 = vadd.f32 0.0, %v1475
    %v1477 = vpop.f32.mrf.mxu0
    %1478 = vdwg.mxu0
    %1480 = vrot.lane.b32.xlu0 %v1020, 8
    %v1481 = vpop.permute.xlu0 %1480
    %1484 = vrot.lane.b32.xlu0 %v1096, 16
    %v1485 = vpop.permute.xlu0 %1484
    %1488 = vrot.lane.b32.xlu0 %v1172, 24
    %v1489 = vpop.permute.xlu0 %1488
    %v1491 = vsel %vm168, %v944, %v1481
    %vm1492 = vcmask 130048
    %v1493 = vsel %vm1492, %v1491, %v1485
    %vm1494 = vcmask 195584
    %v1495 = vsel %vm1494, %v1493, %v1489
    %1497 = vrot.lane.b32.xlu0 %v1324, 8
    %v1498 = vpop.permute.xlu0 %1497
    %1501 = vrot.lane.b32.xlu0 %v1400, 16
    %v1502 = vpop.permute.xlu0 %1501
    %1505 = vrot.lane.b32.xlu0 %v1476, 24
    %v1506 = vpop.permute.xlu0 %1505
    %v1508 = vsel %vm168, %v1248, %v1498
    %v1509 = vsel %vm1492, %v1508, %v1502
    %v1510 = vsel %vm1494, %v1509, %v1506
    %v1511 = vld [vmem:[%s2] sm:$0xff]
    %v1512 = vld [vmem:[%s2 + $0x8] sm:$0xff]
    %v1513 = vld [vmem:[%s2 + $0x10] sm:$0xff]
    %v1514 = vld [vmem:[%s2 + $0x18] sm:$0xff]
    %v1515 = vlaneseq
    %v1516 = vshrl.u32 %v1515, 7
    %v1517 = vsub.s32 2, %v1516
    %v1518 = vrot.slane %v26, %v1517
    %v1520 = vsel %vm27, %v1495, 0
    %v1523 = vsel %vm27, %v1510, 0
    %1525 = vmatprep.subr.mxu0 0.0
    %1526 = vmatpush1.msra.mxu0 0.0
    %1527 = vmatprep.subr.mxu0 0.0
    %1528 = vmatpush1.msra.mxu0 0.0
    %1529 = vmatprep.subr.mxu0 0.0
    %1530 = vmatpush1.msra.mxu0 0.0
    %1531 = vmatprep.subr.mxu0 0.0
    %1532 = vmatpush1.msra.mxu0 0.0
    %1533 = vmatprep.subr.mxu0 0.0
    %1534 = vmatpush1.msra.mxu0 0.0
    %1535 = vmatprep.subr.mxu0 0.0
    %1536 = vmatpush1.msra.mxu0 0.0
    %1537 = vmatprep.subr.mxu0 0.0
    %1538 = vmatpush1.msra.mxu0 0.0
    %1539 = vmatprep.subr.mxu0 0.0
    %1540 = vmatpush1.msra.mxu0 0.0
    %1541 = vmatprep.subr.mxu0 0.0
    %1542 = vmatpush1.msra.mxu0 0.0
    %1543 = vmatprep.subr.mxu0 0.0
    %1544 = vmatpush1.msra.mxu0 0.0
    %1545 = vmatprep.subr.mxu0 0.0
    %1546 = vmatpush1.msra.mxu0 0.0
    %1547 = vmatprep.subr.mxu0 0.0
    %1548 = vmatpush1.msra.mxu0 0.0
    %1549 = vmatprep.subr.mxu0 0.0
    %1550 = vmatpush1.msra.mxu0 %v1514
    %1551 = vmatprep.subr.mxu0 0.0
    %1552 = vmatpush1.msra.mxu0 %v1513
    %1553 = vmatprep.subr.mxu0 0.0
    %1554 = vmatpush1.msra.mxu0 %v1512
    %1555 = vmatprep.subr.mxu0 0.0
    %1556 = vmatpush1.msra.mxu0 %v1511
    %1557 = vmatprep.subr.mxu0 0.0
    %1558 = vmatpush2.msra.mxu0 0.0
    %1559 = vmatprep.subr.mxu0 0.0
    %1560 = vmatpush2.msra.mxu0 0.0
    %1561 = vmatprep.subr.mxu0 0.0
    %1562 = vmatpush2.msra.mxu0 0.0
    %1563 = vmatprep.subr.mxu0 0.0
    %1564 = vmatpush2.msra.mxu0 0.0
    %1565 = vmatprep.subr.mxu0 0.0
    %1566 = vmatpush2.msra.mxu0 0.0
    %1567 = vmatprep.subr.mxu0 0.0
    %1568 = vmatpush2.msra.mxu0 0.0
    %1569 = vmatprep.subr.mxu0 0.0
    %1570 = vmatpush2.msra.mxu0 0.0
    %1571 = vmatprep.subr.mxu0 0.0
    %1572 = vmatpush2.msra.mxu0 0.0
    %1573 = vmatprep.subr.mxu0 0.0
    %1574 = vmatpush2.msra.mxu0 0.0
    %1575 = vmatprep.subr.mxu0 0.0
    %1576 = vmatpush2.msra.mxu0 0.0
    %1577 = vmatprep.subr.mxu0 0.0
    %1578 = vmatpush2.msra.mxu0 0.0
    %1579 = vmatprep.subr.mxu0 0.0
    %1580 = vmatpush2.msra.mxu0 0.0
    %1581 = vmatprep.subr.mxu0 0.0
    %1582 = vmatpush2.msra.mxu0 0.0
    %1583 = vmatprep.subr.mxu0 0.0
    %1584 = vmatpush2.msra.mxu0 0.0
    %1585 = vmatprep.subr.mxu0 0.0
    %1586 = vmatpush2.msra.mxu0 0.0
    %1587 = vmatprep.subr.mxu0 0.0
    %1588 = vmatpush2.msra.mxu0 0.0
    %1589 = vmatprep.mubr.f32.mxu0 0.0
    %1590 = vmatmul.mubr.f32.gmra.mxu0 %v1520
    %v1591 = vpop.f32.mrf.mxu0
    %v1592 = vadd.f32 %v1518, %v1591
    %v1593 = vpop.f32.mrf.mxu0
    %1594 = vmatprep.mubr.f32.mxu0 0.0
    %1595 = vmatmul.mubr.f32.gmra.mxu0 %v1523
    %v1596 = vpop.f32.mrf.mxu0
    %v1597 = vadd.f32 %v1518, %v1596
    %v1598 = vpop.f32.mrf.mxu0
    %1599 = vdwg.mxu0
    %v1600 = vadd.f32 %v24, %v1592
    %v1601 = vadd.f32 %v25, %v1597
    %v1602 = vsel %vm27, %v1600, 0.0
    %1603 = vadd.xlane.f32.xlu0 %v1602
    %v1604 = vpop.xlane.xlu0 %1603
    %v1605 = vsel %vm27, %v1601, 0.0
    %1606 = vadd.xlane.f32.xlu0 %v1605
    %v1607 = vpop.xlane.xlu0 %1606
    %v1608 = vmul.f32 %v1604, %v34
    %v1609 = vmul.f32 %v1607, %v34
    %v1610 = vsub.f32 %v1600, %v1608
    %v1611 = vsub.f32 %v1601, %v1609
    %v1612 = vmul.f32 %v1610, %v1610
    %v1613 = vmul.f32 %v1611, %v1611
    %v1614 = vsel %vm27, %v1612, 0.0
    %1615 = vadd.xlane.f32.xlu0 %v1614
    %v1616 = vpop.xlane.xlu0 %1615
    %v1617 = vsel %vm27, %v1613, 0.0
    %1618 = vadd.xlane.f32.xlu0 %v1617
    %v1619 = vpop.xlane.xlu0 %1618
    %v1620 = vmul.f32 %v1616, %v34
    %v1621 = vmul.f32 %v1619, %v34
    %v1622 = vadd.f32 %v1620, 1e-05
    %v1623 = vadd.f32 %v1621, 1e-05
    %v1624 = vrsqrt.pop %v1622
    %v1625 = vrsqrt.pop %v1623
    %v1626 = vmul.f32 %v1610, %v1624
    %v1627 = vmul.f32 %v1611, %v1625
    %v1628 = vlaneseq
    %v1629 = vshrl.u32 %v1628, 7
    %v1630 = vsub.s32 3, %v1629
    %v1631 = vrot.slane %v26, %v1630
    %v1632 = vmul.f32 %v1626, %v1631
    %v1633 = vmul.f32 %v1627, %v1631
    %v1634 = vlaneseq
    %v1635 = vshrl.u32 %v1634, 7
    %v1636 = vsub.s32 4, %v1635
    %v1637 = vrot.slane %v26, %v1636
    %v1638 = vadd.f32 %v1632, %v1637
    %v1639 = vadd.f32 %v1633, %v1637
    %v1640 = vld [vmem:[%s3] sm:$0xff]
    %v1641 = vld [vmem:[%s3 + $0x8] sm:$0xff]
    %v1642 = vld [vmem:[%s3 + $0x10] sm:$0xff]
    %v1643 = vld [vmem:[%s3 + $0x18] sm:$0xff]
    %v1644 = vlaneseq
    %v1645 = vshrl.u32 %v1644, 7
    %v1646 = vsub.s32 5, %v1645
    %v1647 = vrot.slane %v26, %v1646
    %v1649 = vsel %vm27, %v1638, 0
    %v1652 = vsel %vm27, %v1639, 0
    %1654 = vmatprep.subr.mxu0 0.0
    %1655 = vmatpush1.msra.mxu0 0.0
    %1656 = vmatprep.subr.mxu0 0.0
    %1657 = vmatpush1.msra.mxu0 0.0
    %1658 = vmatprep.subr.mxu0 0.0
    %1659 = vmatpush1.msra.mxu0 0.0
    %1660 = vmatprep.subr.mxu0 0.0
    %1661 = vmatpush1.msra.mxu0 0.0
    %1662 = vmatprep.subr.mxu0 0.0
    %1663 = vmatpush1.msra.mxu0 0.0
    %1664 = vmatprep.subr.mxu0 0.0
    %1665 = vmatpush1.msra.mxu0 0.0
    %1666 = vmatprep.subr.mxu0 0.0
    %1667 = vmatpush1.msra.mxu0 0.0
    %1668 = vmatprep.subr.mxu0 0.0
    %1669 = vmatpush1.msra.mxu0 0.0
    %1670 = vmatprep.subr.mxu0 0.0
    %1671 = vmatpush1.msra.mxu0 0.0
    %1672 = vmatprep.subr.mxu0 0.0
    %1673 = vmatpush1.msra.mxu0 0.0
    %1674 = vmatprep.subr.mxu0 0.0
    %1675 = vmatpush1.msra.mxu0 0.0
    %1676 = vmatprep.subr.mxu0 0.0
    %1677 = vmatpush1.msra.mxu0 0.0
    %1678 = vmatprep.subr.mxu0 0.0
    %1679 = vmatpush1.msra.mxu0 %v1643
    %1680 = vmatprep.subr.mxu0 0.0
    %1681 = vmatpush1.msra.mxu0 %v1642
    %1682 = vmatprep.subr.mxu0 0.0
    %1683 = vmatpush1.msra.mxu0 %v1641
    %1684 = vmatprep.subr.mxu0 0.0
    %1685 = vmatpush1.msra.mxu0 %v1640
    %1686 = vmatprep.subr.mxu0 0.0
    %1687 = vmatpush2.msra.mxu0 0.0
    %1688 = vmatprep.subr.mxu0 0.0
    %1689 = vmatpush2.msra.mxu0 0.0
    %1690 = vmatprep.subr.mxu0 0.0
    %1691 = vmatpush2.msra.mxu0 0.0
    %1692 = vmatprep.subr.mxu0 0.0
    %1693 = vmatpush2.msra.mxu0 0.0
    %1694 = vmatprep.subr.mxu0 0.0
    %1695 = vmatpush2.msra.mxu0 0.0
    %1696 = vmatprep.subr.mxu0 0.0
    %1697 = vmatpush2.msra.mxu0 0.0
    %1698 = vmatprep.subr.mxu0 0.0
    %1699 = vmatpush2.msra.mxu0 0.0
    %1700 = vmatprep.subr.mxu0 0.0
    %1701 = vmatpush2.msra.mxu0 0.0
    %1702 = vmatprep.subr.mxu0 0.0
    %1703 = vmatpush2.msra.mxu0 0.0
    %1704 = vmatprep.subr.mxu0 0.0
    %1705 = vmatpush2.msra.mxu0 0.0
    %1706 = vmatprep.subr.mxu0 0.0
    %1707 = vmatpush2.msra.mxu0 0.0
    %1708 = vmatprep.subr.mxu0 0.0
    %1709 = vmatpush2.msra.mxu0 0.0
    %1710 = vmatprep.subr.mxu0 0.0
    %1711 = vmatpush2.msra.mxu0 0.0
    %1712 = vmatprep.subr.mxu0 0.0
    %1713 = vmatpush2.msra.mxu0 0.0
    %1714 = vmatprep.subr.mxu0 0.0
    %1715 = vmatpush2.msra.mxu0 0.0
    %1716 = vmatprep.subr.mxu0 0.0
    %1717 = vmatpush2.msra.mxu0 0.0
    %1718 = vmatprep.mubr.f32.mxu0 0.0
    %1719 = vmatmul.mubr.f32.gmra.mxu0 %v1649
    %v1720 = vpop.f32.mrf.mxu0
    %v1721 = vadd.f32 %v1647, %v1720
    %v1722 = vpop.f32.mrf.mxu0
    %1723 = vmatprep.mubr.f32.mxu0 0.0
    %1724 = vmatmul.mubr.f32.gmra.mxu0 %v1652
    %v1725 = vpop.f32.mrf.mxu0
    %v1726 = vadd.f32 %v1647, %v1725
    %v1727 = vpop.f32.mrf.mxu0
    %1728 = vdwg.mxu0
    %v1729 = vmul.f32 %v1721, 0.5
    %v1730 = vmul.f32 %v1726, 0.5
    %v1731 = vmul.f32 %v1721, 0.70710677
    %v1732 = vmul.f32 %v1726, 0.70710677
    %v1733 = vand.u32 2147483647, %v1731
    %v1734 = vand.u32 2147483647, %v1732
    %v1735 = vmul.f32 %v1733, 0.3275911
    %v1736 = vmul.f32 %v1734, 0.3275911
    %v1737 = vadd.f32 %v1735, 1.0
    %v1738 = vadd.f32 %v1736, 1.0
    %v1739 = vrcp.pop %v1737
    %v1740 = vrcp.pop %v1738
    %v1741 = vmul.f32 %v1737, %v1739
    %v1742 = vmul.f32 %v1738, %v1740
    %v1743 = vsub.f32 2.0, %v1741
    %v1744 = vsub.f32 2.0, %v1742
    %v1745 = vmul.f32 %v1739, %v1743
    %v1746 = vmul.f32 %v1740, %v1744
    %v1747 = vmul.f32 %v1745, 1.0614054
    %v1748 = vmul.f32 %v1746, 1.0614054
    %v1749 = vadd.f32 %v1747, -1.4531521
    %v1750 = vadd.f32 %v1748, -1.4531521
    %v1751 = vmul.f32 %v1749, %v1745
    %v1752 = vmul.f32 %v1750, %v1746
    %v1753 = vadd.f32 %v1751, 1.4214138
    %v1754 = vadd.f32 %v1752, 1.4214138
    %v1755 = vmul.f32 %v1753, %v1745
    %v1756 = vmul.f32 %v1754, %v1746
    %v1757 = vadd.f32 %v1755, -0.28449672
    %v1758 = vadd.f32 %v1756, -0.28449672
    %v1759 = vmul.f32 %v1757, %v1745
    %v1760 = vmul.f32 %v1758, %v1746
    %v1761 = vadd.f32 %v1759, 0.2548296
    %v1762 = vadd.f32 %v1760, 0.2548296
    %v1763 = vmul.f32 %v1761, %v1745
    %v1764 = vmul.f32 %v1762, %v1746
    %v1765 = vsub.f32 0.0, %v1733
    %v1766 = vsub.f32 0.0, %v1734
    %v1767 = vmul.f32 %v1765, %v1733
    %v1768 = vmul.f32 %v1766, %v1734
    %v1769 = vmul.f32 %v1767, 1.442695
    %v1770 = vpow.pop %v1769
    %v1771 = vmul.f32 %v1768, 1.442695
    %v1772 = vpow.pop %v1771
    %v1773 = vmul.f32 %v1763, %v1770
    %v1774 = vmul.f32 %v1764, %v1772
    %v1775 = vsub.f32 1.0, %v1773
    %v1776 = vsub.f32 1.0, %v1774
    %vm1777 = vcmp.ge.f32.partialorder %v1731, 0.0
    %vm1778 = vcmp.ge.f32.partialorder %v1732, 0.0
    %v1779 = vsub.f32 0.0, %v1775
    %v1780 = vsub.f32 0.0, %v1776
    %v1781 = vsel %vm1777, %v1775, %v1779
    %v1782 = vsel %vm1778, %v1776, %v1780
    %v1783 = vadd.f32 %v1781, 1.0
    %v1784 = vadd.f32 %v1782, 1.0
    %v1785 = vmul.f32 %v1729, %v1783
    %v1786 = vmul.f32 %v1730, %v1784
    %v1787 = vld [vmem:[%s4] sm:$0xff]
    %v1788 = vld [vmem:[%s4 + $0x8] sm:$0xff]
    %v1789 = vld [vmem:[%s4 + $0x10] sm:$0xff]
    %v1790 = vld [vmem:[%s4 + $0x18] sm:$0xff]
    %v1791 = vld [vmem:[%s4 + $0x20] sm:$0xff]
    %v1792 = vld [vmem:[%s4 + $0x28] sm:$0xff]
    %v1793 = vld [vmem:[%s4 + $0x30] sm:$0xff]
    %v1794 = vld [vmem:[%s4 + $0x38] sm:$0xff]
    %v1795 = vld [vmem:[%s4 + $0x40] sm:$0xff]
    %v1796 = vld [vmem:[%s4 + $0x48] sm:$0xff]
    %v1797 = vld [vmem:[%s4 + $0x50] sm:$0xff]
    %v1798 = vld [vmem:[%s4 + $0x58] sm:$0xff]
    %v1799 = vld [vmem:[%s4 + $0x60] sm:$0xff]
    %v1800 = vld [vmem:[%s4 + $0x68] sm:$0xff]
    %v1801 = vld [vmem:[%s4 + $0x70] sm:$0xff]
    %v1802 = vld [vmem:[%s4 + $0x78] sm:$0xff]
    %v1803 = vlaneseq
    %v1804 = vshrl.u32 %v1803, 7
    %v1805 = vsub.s32 6, %v1804
    %v1806 = vrot.slane %v26, %v1805
    %1807 = vmatprep.subr.mxu0 0.0
    %1808 = vmatpush1.msra.mxu0 %v1802
    %1809 = vmatprep.subr.mxu0 0.0
    %1810 = vmatpush1.msra.mxu0 %v1801
    %1811 = vmatprep.subr.mxu0 0.0
    %1812 = vmatpush1.msra.mxu0 %v1800
    %1813 = vmatprep.subr.mxu0 0.0
    %1814 = vmatpush1.msra.mxu0 %v1799
    %1815 = vmatprep.subr.mxu0 0.0
    %1816 = vmatpush1.msra.mxu0 %v1798
    %1817 = vmatprep.subr.mxu0 0.0
    %1818 = vmatpush1.msra.mxu0 %v1797
    %1819 = vmatprep.subr.mxu0 0.0
    %1820 = vmatpush1.msra.mxu0 %v1796
    %1821 = vmatprep.subr.mxu0 0.0
    %1822 = vmatpush1.msra.mxu0 %v1795
    %1823 = vmatprep.subr.mxu0 0.0
    %1824 = vmatpush1.msra.mxu0 %v1794
    %1825 = vmatprep.subr.mxu0 0.0
    %1826 = vmatpush1.msra.mxu0 %v1793
    %1827 = vmatprep.subr.mxu0 0.0
    %1828 = vmatpush1.msra.mxu0 %v1792
    %1829 = vmatprep.subr.mxu0 0.0
    %1830 = vmatpush1.msra.mxu0 %v1791
    %1831 = vmatprep.subr.mxu0 0.0
    %1832 = vmatpush1.msra.mxu0 %v1790
    %1833 = vmatprep.subr.mxu0 0.0
    %1834 = vmatpush1.msra.mxu0 %v1789
    %1835 = vmatprep.subr.mxu0 0.0
    %1836 = vmatpush1.msra.mxu0 %v1788
    %1837 = vmatprep.subr.mxu0 0.0
    %1838 = vmatpush1.msra.mxu0 %v1787
    %1839 = vmatprep.subr.mxu0 0.0
    %1840 = vmatpush2.msra.mxu0 0.0
    %1841 = vmatprep.subr.mxu0 0.0
    %1842 = vmatpush2.msra.mxu0 0.0
    %1843 = vmatprep.subr.mxu0 0.0
    %1844 = vmatpush2.msra.mxu0 0.0
    %1845 = vmatprep.subr.mxu0 0.0
    %1846 = vmatpush2.msra.mxu0 0.0
    %1847 = vmatprep.subr.mxu0 0.0
    %1848 = vmatpush2.msra.mxu0 0.0
    %1849 = vmatprep.subr.mxu0 0.0
    %1850 = vmatpush2.msra.mxu0 0.0
    %1851 = vmatprep.subr.mxu0 0.0
    %1852 = vmatpush2.msra.mxu0 0.0
    %1853 = vmatprep.subr.mxu0 0.0
    %1854 = vmatpush2.msra.mxu0 0.0
    %1855 = vmatprep.subr.mxu0 0.0
    %1856 = vmatpush2.msra.mxu0 0.0
    %1857 = vmatprep.subr.mxu0 0.0
    %1858 = vmatpush2.msra.mxu0 0.0
    %1859 = vmatprep.subr.mxu0 0.0
    %1860 = vmatpush2.msra.mxu0 0.0
    %1861 = vmatprep.subr.mxu0 0.0
    %1862 = vmatpush2.msra.mxu0 0.0
    %1863 = vmatprep.subr.mxu0 0.0
    %1864 = vmatpush2.msra.mxu0 0.0
    %1865 = vmatprep.subr.mxu0 0.0
    %1866 = vmatpush2.msra.mxu0 0.0
    %1867 = vmatprep.subr.mxu0 0.0
    %1868 = vmatpush2.msra.mxu0 0.0
    %1869 = vmatprep.subr.mxu0 0.0
    %1870 = vmatpush2.msra.mxu0 0.0
    %1871 = vmatprep.mubr.f32.mxu0 0.0
    %1872 = vmatmul.mubr.f32.gmra.mxu0 %v1785
    %v1873 = vpop.f32.mrf.mxu0
    %v1874 = vadd.f32 %v1806, %v1873
    %v1875 = vpop.f32.mrf.mxu0
    %1876 = vmatprep.mubr.f32.mxu0 0.0
    %1877 = vmatmul.mubr.f32.gmra.mxu0 %v1786
    %v1878 = vpop.f32.mrf.mxu0
    %v1879 = vadd.f32 %v1806, %v1878
    %v1880 = vpop.f32.mrf.mxu0
    %1881 = vdwg.mxu0
    %v1882 = vadd.f32 %v1600, %v1874
    %v1883 = vadd.f32 %v1601, %v1879
    %1884 = vst.msk [vmem:[#allocation2] sm:$0xff] %vm27, %v1882
    %1885 = vst.msk [vmem:[#allocation2 + $0x8] sm:$0xff] %vm27, %v1883
    // Predicated region
    $region26: #{tpu_custom_call.1} parent=1 // pred_check
      _
    $region27: #{tpu_custom_call.1} parent=1 // pred_check_branch
      %1887 = sbr.rel (0) target = $region29
    $region28: #{tpu_custom_call.1} parent=1 // pred_region
      %s1889 = ssub.s32 256, 256
      %1890 = vsyncadd [#allocation3], %s1889
      %s1891 = sshll.u32 [#allocation2], 4
      %s1892 = int_to_ptr.vmem [resolvable:$true] %s1891
      %1897 = dma.vmem_to_hbm [thread:$0]  %s1892, 256, %s6, [#allocation3], 128, 128, 8
    $region29: #{tpu_custom_call.1} parent=1 // pred_fallthru
      _
    // Predicated region
    $region30: #{tpu_custom_call.1} parent=1 // pred_check
      _
    $region31: #{tpu_custom_call.1} parent=1 // pred_check_branch
      %1899 = sbr.rel (0) target = $region33
    $region32: #{tpu_custom_call.1} parent=1 // pred_region
      %1900 = dma.done [#allocation3], 256
    $region33: #{tpu_custom_call.1} parent=1 // pred_fallthru
      _
    %1901 = vsyncpa [#allocation3], 1

</llo_original>
